<compile_context>
chip_gen: v5e
topology: v5e:2x2
jax: 0.10.0
libtpu: 0.0.40
codegen_flags: <defaults>
</compile_context>

<pallas_src>
import numpy as np
import jax
import jax.numpy as jnp
from jax.experimental import pallas as pl
from jax.experimental.pallas import tpu as pltpu

EPS = 1e-5  # torch GroupNorm default


# ---------------------------------------------------------------- helpers ----
def _mish_kernel(x):
    # x * tanh(softplus(x)) == x * u / (u + 2)  with u = e*(e+2), e = exp(x).
    # One EUP exp + one divide (vs exp + log1p + tanh).  Clamp avoids overflow;
    # for x > 20 the ratio is 1.0 in f32 anyway.
    e = jnp.exp(jnp.minimum(x, 20.0))
    u = e * (e + 2.0)
    return x * (u / (u + 2.0))


def _softplus(x):
    return jnp.maximum(x, 0.0) + jnp.log1p(jnp.exp(-jnp.abs(x)))


def _mish_ref(x):
    return x * jnp.tanh(_softplus(x))


def _conv_toeplitz(w, W):
    """(3,3,Cin,Cout) conv weight -> (3*(W+2)*Cin, W*Cout) lane-dense matmul matrix.

    out[h, w*Cout+o] = sum_{di,dj,c} xpad2d[h+di, (w+dj)*Cin+c] * w[di,dj,c,o]
    with LHS  L[h, di*(W+2)*Cin + w'*Cin + c] = xpad2d[h+di, w'*Cin + c].
    """
    w = np.asarray(w, np.float32)
    kh, kw, Cin, Cout = w.shape
    Wp = W + 2
    T = np.zeros((kh, Wp, Cin, W, Cout), np.float32)
    for di in range(kh):
        for dj in range(kw):
            for wc in range(W):
                T[di, wc + dj, :, wc, :] = w[di, dj]
    return jnp.asarray(T.reshape(kh * Wp * Cin, W * Cout))


# ----------------------------------------------------------------- kernel ----
def _make_fused_kernel(H, W, Cin, Cout, has_time, has_cond, has_res):
    def rpad(a, C):
        # reflection-pad by 1 pixel in H and W; a is a lane-dense (H, W*C) slab.
        left = a[:, C:2 * C]                       # pixel column w = 1
        right = a[:, (W - 2) * C:(W - 1) * C]      # pixel column w = W-2
        a = jnp.concatenate([left, a, right], axis=1)             # (H, (W+2)*C)
        a = jnp.concatenate([a[1:2], a, a[H - 2:H - 1]], axis=0)  # (H+2, (W+2)*C)
        return a

    def conv_gn_mish(a, C, T, b, gamma, beta, gm):
        ap = rpad(a, C)                                           # (H+2, (W+2)*C)
        # fold the 3 kernel rows into the contraction dim -> single MXU matmul
        L = jnp.concatenate([ap[0:H], ap[1:H + 1], ap[2:H + 2]], axis=1)
        z = jnp.dot(L, T, preferred_element_type=jnp.float32) + b  # (H, W*Cout)
        # GroupNorm (per sample): one group-average matmul per statistic.
        csum = jnp.sum(z, axis=0, keepdims=True)                  # (1, W*Cout)
        mean = jnp.dot(csum, gm, preferred_element_type=jnp.float32)
        cent = z - mean
        sqsum = jnp.sum(cent * cent, axis=0, keepdims=True)       # (1, W*Cout)
        var = jnp.dot(sqsum, gm, preferred_element_type=jnp.float32)
        hn = cent * jax.lax.rsqrt(var + EPS)
        return _mish_kernel(hn * gamma + beta)

    def kernel(*refs):
        it = iter(refs)
        x_ref = next(it)
        t_ref = next(it) if has_time else None
        cond_ref = next(it) if has_cond else None
        t1_ref, b1_ref, g1_ref, be1_ref = next(it), next(it), next(it), next(it)
        t2_ref, b2_ref, g2_ref, be2_ref = next(it), next(it), next(it), next(it)
        gm_ref = next(it)
        if has_time:
            wmlp_ref, bmlp_ref = next(it), next(it)
        if has_res:
            wres_ref, bres_ref = next(it), next(it)
        o_ref = next(it)

        x = x_ref[0]                                              # (H, W*Cin)
        gm = gm_ref[...]

        h = conv_gn_mish(x, Cin, t1_ref[...], b1_ref[...],
                         g1_ref[...], be1_ref[...], gm)           # (H, W*Cout)
        if has_time:
            temb = jnp.dot(_mish_kernel(t_ref[0]), wmlp_ref[...],
                           preferred_element_type=jnp.float32) + bmlp_ref[...]
            h = h + temb                                          # (1, W*Cout) bcast
        if has_cond:
            h = h + cond_ref[0]
        h = conv_gn_mish(h, Cout, t2_ref[...], b2_ref[...],
                         g2_ref[...], be2_ref[...], gm)
        if has_res:
            res = jnp.dot(x, wres_ref[...],
                          preferred_element_type=jnp.float32) + bres_ref[...]
        else:
            res = x                                               # Cin == Cout
        o_ref[0] = h + res

    return kernel


# ---------------------------------------------------------------- wrapper ----
def resnet_block(x_nchw, params, groups, time_emb=None, cond_nchw=None):
    N, Cin, H, W = x_nchw.shape
    Cout = params["w1"].shape[-1]
    cpg = Cout // groups
    WCin, WCout = W * Cin, W * Cout

    has_time = time_emb is not None
    has_cond = cond_nchw is not None
    has_res = (Cin != Cout)       # nn.Identity residual when dims match -> skip matmul

    # NHWC -> lane-dense (N, H, W*C) slabs (same element order, free reshape).
    x2d = jnp.transpose(x_nchw, (0, 2, 3, 1)).astype(jnp.float32).reshape(N, H, WCin)

    # ---- wrapper-side weight re-layout (done once, cacheable) ----
    T1 = _conv_toeplitz(params["w1"], W)                          # (3*(W+2)*Cin,  W*Cout)
    T2 = _conv_toeplitz(params["w2"], W)                          # (3*(W+2)*Cout, W*Cout)
    b1 = jnp.tile(params["b1"].astype(jnp.float32), (1, W))
    b2 = jnp.tile(params["b2"].astype(jnp.float32), (1, W))
    g1 = jnp.tile(params["gamma1"].astype(jnp.float32), (1, W))
    be1 = jnp.tile(params["beta1"].astype(jnp.float32), (1, W))
    g2 = jnp.tile(params["gamma2"].astype(jnp.float32), (1, W))
    be2 = jnp.tile(params["beta2"].astype(jnp.float32), (1, W))
    same_grp = ((np.arange(Cout) // cpg)[:, None] ==
                (np.arange(Cout) // cpg)[None, :]).astype(np.float32)
    gm = jnp.asarray(np.kron(np.ones((W, W), np.float32), same_grp)
                     / float(cpg * H * W))                        # (W*Cout, W*Cout)

    def shared(a):
        nd = a.ndim
        return pl.BlockSpec(a.shape, lambda n, _nd=nd: (0,) * _nd)

    args = [x2d]
    specs = [pl.BlockSpec((1, H, WCin), lambda n: (n, 0, 0))]

    if has_time:
        Tdim = time_emb.shape[1]
        args.append(time_emb.astype(jnp.float32).reshape(N, 1, Tdim))
        specs.append(pl.BlockSpec((1, 1, Tdim), lambda n: (n, 0, 0)))
    if has_cond:
        cond2d = (jnp.transpose(cond_nchw, (0, 2, 3, 1))
                  .astype(jnp.float32).reshape(N, H, WCout))
        args.append(cond2d)
        specs.append(pl.BlockSpec((1, H, WCout), lambda n: (n, 0, 0)))

    for a in (T1, b1, g1, be1, T2, b2, g2, be2, gm):
        args.append(a)
        specs.append(shared(a))

    if has_time:
        wmlp = jnp.tile(params["w_mlp"].astype(jnp.float32), (1, W))  # (Tdim, W*Cout)
        bmlp = jnp.tile(params["b_mlp"].astype(jnp.float32), (1, W))
        args += [wmlp, bmlp]
        specs += [shared(wmlp), shared(bmlp)]
    if has_res:
        wres = jnp.asarray(np.kron(np.eye(W, dtype=np.float32),
                                   np.asarray(params["w_res"], np.float32)))
        bres = jnp.tile(params["b_res"].astype(jnp.float32), (1, W))
        args += [wres, bres]
        specs += [shared(wres), shared(bres)]

    kernel = _make_fused_kernel(H, W, Cin, Cout, has_time, has_cond, has_res)

    out2d = pl.pallas_call(
        kernel,
        out_shape=jax.ShapeDtypeStruct((N, H, WCout), jnp.float32),
        grid=(N,),
        in_specs=specs,
        out_specs=pl.BlockSpec((1, H, WCout), lambda n: (n, 0, 0)),
        compiler_params=pltpu.CompilerParams(
            dimension_semantics=("parallel",)),   # batch -> megacore on v7x
    )(*args)

    out = out2d.reshape(N, H, W, Cout)
    return jnp.transpose(out, (0, 3, 1, 2))                       # back to NCHW


# --------------------------------------------------- params & pure-JAX ref ---
def make_params(key, dim, dim_out, time_emb_dim, groups):
    ks = jax.random.split(key, 8)
    p = {
        "w1": jax.random.normal(ks[0], (3, 3, dim, dim_out), jnp.float32) * 0.1,
        "b1": jax.random.normal(ks[1], (1, dim_out), jnp.float32) * 0.1,
        "gamma1": (1.0 + 0.01 * jnp.arange(dim_out, dtype=jnp.float32))[None, :],
        "beta1": (0.01 * jnp.arange(dim_out, dtype=jnp.float32))[None, :],
        "w2": jax.random.normal(ks[2], (3, 3, dim_out, dim_out), jnp.float32) * 0.1,
        "b2": jax.random.normal(ks[3], (1, dim_out), jnp.float32) * 0.1,
        "gamma2": (1.0 - 0.01 * jnp.arange(dim_out, dtype=jnp.float32))[None, :],
        "beta2": (-0.01 * jnp.arange(dim_out, dtype=jnp.float32))[None, :],
    }
    if time_emb_dim > 0:
        p["w_mlp"] = jax.random.normal(ks[4], (time_emb_dim, dim_out), jnp.float32) * 0.1
        p["b_mlp"] = jax.random.normal(ks[5], (1, dim_out), jnp.float32) * 0.1
    if dim != dim_out:
        p["w_res"] = jax.random.normal(ks[6], (dim, dim_out), jnp.float32) * 0.1
        p["b_res"] = jax.random.normal(ks[7], (1, dim_out), jnp.float32) * 0.1
    else:
        p["w_res"] = jnp.eye(dim, dtype=jnp.float32)      # nn.Identity equivalent
        p["b_res"] = jnp.zeros((1, dim_out), jnp.float32)
    return p


def reference(x_nchw, params, groups, time_emb=None, cond_nchw=None):
    """Pure-JAX NHWC reference of the PyTorch forward (correctness oracle)."""
    x = jnp.transpose(x_nchw, (0, 2, 3, 1)).astype(jnp.float32)

    def block(y, w, b, gamma, beta):
        yp = jnp.pad(y, ((0, 0), (1, 1), (1, 1), (0, 0)), mode="reflect")
        z = jax.lax.conv_general_dilated(
            yp, w, (1, 1), "VALID",
            dimension_numbers=("NHWC", "HWIO", "NHWC")) + b
        Nb, Hb, Wb, C = z.shape
        zg = z.reshape(Nb, Hb, Wb, groups, C // groups)
        mean = zg.mean(axis=(1, 2, 4), keepdims=True)
        var = ((zg - mean) ** 2).mean(axis=(1, 2, 4), keepdims=True)
        zn = ((zg - mean) / jnp.sqrt(var + EPS)).reshape(Nb, Hb, Wb, C)
        return _mish_ref(zn * gamma[0] + beta[0])

    h = block(x, params["w1"], params["b1"], params["gamma1"], params["beta1"])
    if time_emb is not None:
        t = jnp.dot(_mish_ref(time_emb.astype(jnp.float32)), params["w_mlp"]) + params["b_mlp"]
        h = h + t[:, None, None, :]
    if cond_nchw is not None:
        h = h + jnp.transpose(cond_nchw, (0, 2, 3, 1))
    h = block(h, params["w2"], params["b2"], params["gamma2"], params["beta2"])
    res = jnp.einsum("nhwc,cd->nhwd", x, params["w_res"]) + params["b_res"]
    return jnp.transpose(h + res, (0, 3, 1, 2))


# ------------------------------------------------------------------- main ----
if __name__ == "__main__":
    N, dim, dim_out, H, W = 2, 4, 16, 16, 16
    groups, time_emb_dim = 8, 8

    key = jax.random.PRNGKey(0)
    kx, kt, kc, kp = jax.random.split(key, 4)
    x = jax.random.normal(kx, (N, dim, H, W), jnp.float32)         # NCHW input
    time_emb = jax.random.normal(kt, (N, time_emb_dim), jnp.float32)
    cond = jax.random.normal(kc, (N, dim_out, H, W), jnp.float32)  # NCHW cond

    params = make_params(kp, dim, dim_out, time_emb_dim, groups)

    out = resnet_block(x, params, groups, time_emb=time_emb, cond_nchw=cond)
    out = jax.block_until_ready(out)

    ref = reference(x, params, groups, time_emb=time_emb, cond_nchw=cond)
    assert out.shape == (N, dim_out, H, W)
    np.testing.assert_allclose(np.asarray(out), np.asarray(ref),
                               rtol=1e-4, atol=1e-4)
    print("KERNEL_OK")
</pallas_src>

<mosaic_0001>
module attributes {stable_mosaic.version = 11 : i64} {
  func.func @kernel(%arg0: i32, %arg1: memref<1x16x64xf32, #tpu.memory_space<vmem>>, %arg2: memref<1x1x8xf32, #tpu.memory_space<vmem>>, %arg3: memref<1x16x256xf32, #tpu.memory_space<vmem>>, %arg4: memref<216x256xf32, #tpu.memory_space<vmem>>, %arg5: memref<1x256xf32, #tpu.memory_space<vmem>>, %arg6: memref<1x256xf32, #tpu.memory_space<vmem>>, %arg7: memref<1x256xf32, #tpu.memory_space<vmem>>, %arg8: memref<864x256xf32, #tpu.memory_space<vmem>>, %arg9: memref<1x256xf32, #tpu.memory_space<vmem>>, %arg10: memref<1x256xf32, #tpu.memory_space<vmem>>, %arg11: memref<1x256xf32, #tpu.memory_space<vmem>>, %arg12: memref<256x256xf32, #tpu.memory_space<vmem>>, %arg13: memref<8x256xf32, #tpu.memory_space<vmem>>, %arg14: memref<1x256xf32, #tpu.memory_space<vmem>>, %arg15: memref<64x256xf32, #tpu.memory_space<vmem>>, %arg16: memref<1x256xf32, #tpu.memory_space<vmem>>, %arg17: memref<1x16x256xf32, #tpu.memory_space<vmem>>) attributes {dimension_semantics = [#tpu.dimension_semantics<parallel>], iteration_bounds = array<i64: 2>, scalar_prefetch = 0 : i64, scratch_operands = 0 : i64, tpu.core_type = #tpu.core_type<tc>, window_params = [{transform_indices = @transform_0, window_bounds = array<i64: 1, 16, 64>}, {transform_indices = @transform_1, window_bounds = array<i64: 1, 1, 8>}, {transform_indices = @transform_2, window_bounds = array<i64: 1, 16, 256>}, {pipeline_mode = #tpu.pipeline_mode<synchronous>, transform_indices = @transform_3, window_bounds = array<i64: 216, 256>}, {pipeline_mode = #tpu.pipeline_mode<synchronous>, transform_indices = @transform_4, window_bounds = array<i64: 1, 256>}, {pipeline_mode = #tpu.pipeline_mode<synchronous>, transform_indices = @transform_5, window_bounds = array<i64: 1, 256>}, {pipeline_mode = #tpu.pipeline_mode<synchronous>, transform_indices = @transform_6, window_bounds = array<i64: 1, 256>}, {pipeline_mode = #tpu.pipeline_mode<synchronous>, transform_indices = @transform_7, window_bounds = array<i64: 864, 256>}, {pipeline_mode = #tpu.pipeline_mode<synchronous>, transform_indices = @transform_8, window_bounds = array<i64: 1, 256>}, {pipeline_mode = #tpu.pipeline_mode<synchronous>, transform_indices = @transform_9, window_bounds = array<i64: 1, 256>}, {pipeline_mode = #tpu.pipeline_mode<synchronous>, transform_indices = @transform_10, window_bounds = array<i64: 1, 256>}, {pipeline_mode = #tpu.pipeline_mode<synchronous>, transform_indices = @transform_11, window_bounds = array<i64: 256, 256>}, {pipeline_mode = #tpu.pipeline_mode<synchronous>, transform_indices = @transform_12, window_bounds = array<i64: 8, 256>}, {pipeline_mode = #tpu.pipeline_mode<synchronous>, transform_indices = @transform_13, window_bounds = array<i64: 1, 256>}, {pipeline_mode = #tpu.pipeline_mode<synchronous>, transform_indices = @transform_14, window_bounds = array<i64: 64, 256>}, {pipeline_mode = #tpu.pipeline_mode<synchronous>, transform_indices = @transform_15, window_bounds = array<i64: 1, 256>}, {transform_indices = @transform_16, window_bounds = array<i64: 1, 16, 256>}]} {
    %c0 = arith.constant 0 : index
    %c0_0 = arith.constant 0 : index
    %c0_1 = arith.constant 0 : index
    %0 = vector.load %arg1[%c0, %c0_0, %c0_1] : memref<1x16x64xf32, #tpu.memory_space<vmem>>, vector<1x16x64xf32>
    %1 = vector.shape_cast %0 : vector<1x16x64xf32> to vector<16x64xf32>
    %c0_2 = arith.constant 0 : index
    %c0_3 = arith.constant 0 : index
    %2 = vector.load %arg12[%c0_2, %c0_3] : memref<256x256xf32, #tpu.memory_space<vmem>>, vector<256x256xf32>
    %c0_4 = arith.constant 0 : index
    %c0_5 = arith.constant 0 : index
    %3 = vector.load %arg4[%c0_4, %c0_5] : memref<216x256xf32, #tpu.memory_space<vmem>>, vector<216x256xf32>
    %c0_6 = arith.constant 0 : index
    %c0_7 = arith.constant 0 : index
    %4 = vector.load %arg5[%c0_6, %c0_7] : memref<1x256xf32, #tpu.memory_space<vmem>>, vector<1x256xf32>
    %c0_8 = arith.constant 0 : index
    %c0_9 = arith.constant 0 : index
    %5 = vector.load %arg6[%c0_8, %c0_9] : memref<1x256xf32, #tpu.memory_space<vmem>>, vector<1x256xf32>
    %c0_10 = arith.constant 0 : index
    %c0_11 = arith.constant 0 : index
    %6 = vector.load %arg7[%c0_10, %c0_11] : memref<1x256xf32, #tpu.memory_space<vmem>>, vector<1x256xf32>
    %7 = vector.extract_strided_slice %1 {offsets = [0, 4], sizes = [16, 4], strides = [1, 1]} : vector<16x64xf32> to vector<16x4xf32>
    %8 = vector.extract_strided_slice %1 {offsets = [0, 56], sizes = [16, 4], strides = [1, 1]} : vector<16x64xf32> to vector<16x4xf32>
    %9 = tpu.concatenate %7, %1, %8 in 1 : vector<16x4xf32>, vector<16x64xf32>, vector<16x4xf32> -> vector<16x72xf32>
    %10 = vector.extract_strided_slice %9 {offsets = [1, 0], sizes = [1, 72], strides = [1, 1]} : vector<16x72xf32> to vector<1x72xf32>
    %11 = vector.extract_strided_slice %9 {offsets = [14, 0], sizes = [1, 72], strides = [1, 1]} : vector<16x72xf32> to vector<1x72xf32>
    %12 = tpu.concatenate %10, %9, %11 in 0 : vector<1x72xf32>, vector<16x72xf32>, vector<1x72xf32> -> vector<18x72xf32>
    %13 = vector.extract_strided_slice %12 {offsets = [0, 0], sizes = [16, 72], strides = [1, 1]} : vector<18x72xf32> to vector<16x72xf32>
    %14 = vector.extract_strided_slice %12 {offsets = [1, 0], sizes = [16, 72], strides = [1, 1]} : vector<18x72xf32> to vector<16x72xf32>
    %15 = vector.extract_strided_slice %12 {offsets = [2, 0], sizes = [16, 72], strides = [1, 1]} : vector<18x72xf32> to vector<16x72xf32>
    %16 = tpu.concatenate %13, %14, %15 in 1 : vector<16x72xf32>, vector<16x72xf32>, vector<16x72xf32> -> vector<16x216xf32>
    %cst = arith.constant dense<0.000000e+00> : vector<16x256xf32>
    %17 = tpu.matmul %16, %3, %cst {dimension_numbers = #tpu.dot_dimension_numbers<[1], [0], [0], [1], [0, 0, 1, 1], [], []>} : vector<16x216xf32>, vector<216x256xf32>, vector<16x256xf32> -> vector<16x256xf32>
    %18 = vector.broadcast %4 : vector<1x256xf32> to vector<16x256xf32>
    %19 = arith.addf %17, %18 : vector<16x256xf32>
    %cst_12 = arith.constant dense<0.000000e+00> : vector<256xf32>
    %20 = vector.multi_reduction <add>, %19, %cst_12 [0] : vector<16x256xf32> to vector<256xf32>
    %21 = vector.shape_cast %20 : vector<256xf32> to vector<1x256xf32>
    %cst_13 = arith.constant dense<0.000000e+00> : vector<1x256xf32>
    %22 = tpu.matmul %21, %2, %cst_13 {dimension_numbers = #tpu.dot_dimension_numbers<[1], [0], [0], [1], [0, 0, 1, 1], [], []>} : vector<1x256xf32>, vector<256x256xf32>, vector<1x256xf32> -> vector<1x256xf32>
    %23 = vector.broadcast %22 : vector<1x256xf32> to vector<16x256xf32>
    %24 = arith.subf %19, %23 : vector<16x256xf32>
    %25 = arith.mulf %24, %24 : vector<16x256xf32>
    %cst_14 = arith.constant dense<0.000000e+00> : vector<256xf32>
    %26 = vector.multi_reduction <add>, %25, %cst_14 [0] : vector<16x256xf32> to vector<256xf32>
    %27 = vector.shape_cast %26 : vector<256xf32> to vector<1x256xf32>
    %cst_15 = arith.constant dense<0.000000e+00> : vector<1x256xf32>
    %28 = tpu.matmul %27, %2, %cst_15 {dimension_numbers = #tpu.dot_dimension_numbers<[1], [0], [0], [1], [0, 0, 1, 1], [], []>} : vector<1x256xf32>, vector<256x256xf32>, vector<1x256xf32> -> vector<1x256xf32>
    %cst_16 = arith.constant 9.99999974E-6 : f32
    %29 = vector.broadcast %cst_16 : f32 to vector<1x256xf32>
    %30 = arith.addf %28, %29 : vector<1x256xf32>
    %31 = math.rsqrt %30 : vector<1x256xf32>
    %32 = vector.broadcast %31 : vector<1x256xf32> to vector<16x256xf32>
    %33 = arith.mulf %24, %32 : vector<16x256xf32>
    %34 = vector.broadcast %5 : vector<1x256xf32> to vector<16x256xf32>
    %35 = arith.mulf %33, %34 : vector<16x256xf32>
    %36 = vector.broadcast %6 : vector<1x256xf32> to vector<16x256xf32>
    %37 = arith.addf %35, %36 : vector<16x256xf32>
    %cst_17 = arith.constant 2.000000e+01 : f32
    %38 = vector.broadcast %cst_17 : f32 to vector<16x256xf32>
    %39 = arith.minimumf %37, %38 : vector<16x256xf32>
    %40 = math.exp %39 : vector<16x256xf32>
    %cst_18 = arith.constant 2.000000e+00 : f32
    %41 = vector.broadcast %cst_18 : f32 to vector<16x256xf32>
    %42 = arith.addf %40, %41 : vector<16x256xf32>
    %43 = arith.mulf %40, %42 : vector<16x256xf32>
    %cst_19 = arith.constant 2.000000e+00 : f32
    %44 = vector.broadcast %cst_19 : f32 to vector<16x256xf32>
    %45 = arith.addf %43, %44 : vector<16x256xf32>
    %46 = arith.divf %43, %45 : vector<16x256xf32>
    %47 = arith.mulf %37, %46 : vector<16x256xf32>
    %c0_20 = arith.constant 0 : index
    %c0_21 = arith.constant 0 : index
    %c0_22 = arith.constant 0 : index
    %48 = vector.load %arg2[%c0_20, %c0_21, %c0_22] : memref<1x1x8xf32, #tpu.memory_space<vmem>>, vector<1x1x8xf32>
    %49 = vector.shape_cast %48 : vector<1x1x8xf32> to vector<1x8xf32>
    %cst_23 = arith.constant 2.000000e+01 : f32
    %50 = vector.broadcast %cst_23 : f32 to vector<1x8xf32>
    %51 = arith.minimumf %49, %50 : vector<1x8xf32>
    %52 = math.exp %51 : vector<1x8xf32>
    %cst_24 = arith.constant 2.000000e+00 : f32
    %53 = vector.broadcast %cst_24 : f32 to vector<1x8xf32>
    %54 = arith.addf %52, %53 : vector<1x8xf32>
    %55 = arith.mulf %52, %54 : vector<1x8xf32>
    %cst_25 = arith.constant 2.000000e+00 : f32
    %56 = vector.broadcast %cst_25 : f32 to vector<1x8xf32>
    %57 = arith.addf %55, %56 : vector<1x8xf32>
    %58 = arith.divf %55, %57 : vector<1x8xf32>
    %59 = arith.mulf %49, %58 : vector<1x8xf32>
    %c0_26 = arith.constant 0 : index
    %c0_27 = arith.constant 0 : index
    %60 = vector.load %arg13[%c0_26, %c0_27] : memref<8x256xf32, #tpu.memory_space<vmem>>, vector<8x256xf32>
    %cst_28 = arith.constant dense<0.000000e+00> : vector<1x256xf32>
    %61 = tpu.matmul %59, %60, %cst_28 {dimension_numbers = #tpu.dot_dimension_numbers<[1], [0], [0], [1], [0, 0, 1, 1], [], []>} : vector<1x8xf32>, vector<8x256xf32>, vector<1x256xf32> -> vector<1x256xf32>
    %c0_29 = arith.constant 0 : index
    %c0_30 = arith.constant 0 : index
    %62 = vector.load %arg14[%c0_29, %c0_30] : memref<1x256xf32, #tpu.memory_space<vmem>>, vector<1x256xf32>
    %63 = arith.addf %61, %62 : vector<1x256xf32>
    %64 = vector.broadcast %63 : vector<1x256xf32> to vector<16x256xf32>
    %65 = arith.addf %47, %64 : vector<16x256xf32>
    %c0_31 = arith.constant 0 : index
    %c0_32 = arith.constant 0 : index
    %c0_33 = arith.constant 0 : index
    %66 = vector.load %arg3[%c0_31, %c0_32, %c0_33] : memref<1x16x256xf32, #tpu.memory_space<vmem>>, vector<1x16x256xf32>
    %67 = vector.shape_cast %66 : vector<1x16x256xf32> to vector<16x256xf32>
    %68 = arith.addf %65, %67 : vector<16x256xf32>
    %c0_34 = arith.constant 0 : index
    %c0_35 = arith.constant 0 : index
    %69 = vector.load %arg8[%c0_34, %c0_35] : memref<864x256xf32, #tpu.memory_space<vmem>>, vector<864x256xf32>
    %c0_36 = arith.constant 0 : index
    %c0_37 = arith.constant 0 : index
    %70 = vector.load %arg9[%c0_36, %c0_37] : memref<1x256xf32, #tpu.memory_space<vmem>>, vector<1x256xf32>
    %c0_38 = arith.constant 0 : index
    %c0_39 = arith.constant 0 : index
    %71 = vector.load %arg10[%c0_38, %c0_39] : memref<1x256xf32, #tpu.memory_space<vmem>>, vector<1x256xf32>
    %c0_40 = arith.constant 0 : index
    %c0_41 = arith.constant 0 : index
    %72 = vector.load %arg11[%c0_40, %c0_41] : memref<1x256xf32, #tpu.memory_space<vmem>>, vector<1x256xf32>
    %73 = vector.extract_strided_slice %68 {offsets = [0, 16], sizes = [16, 16], strides = [1, 1]} : vector<16x256xf32> to vector<16x16xf32>
    %74 = vector.extract_strided_slice %68 {offsets = [0, 224], sizes = [16, 16], strides = [1, 1]} : vector<16x256xf32> to vector<16x16xf32>
    %75 = tpu.concatenate %73, %68, %74 in 1 : vector<16x16xf32>, vector<16x256xf32>, vector<16x16xf32> -> vector<16x288xf32>
    %76 = vector.extract_strided_slice %75 {offsets = [1, 0], sizes = [1, 288], strides = [1, 1]} : vector<16x288xf32> to vector<1x288xf32>
    %77 = vector.extract_strided_slice %75 {offsets = [14, 0], sizes = [1, 288], strides = [1, 1]} : vector<16x288xf32> to vector<1x288xf32>
    %78 = tpu.concatenate %76, %75, %77 in 0 : vector<1x288xf32>, vector<16x288xf32>, vector<1x288xf32> -> vector<18x288xf32>
    %79 = vector.extract_strided_slice %78 {offsets = [0, 0], sizes = [16, 288], strides = [1, 1]} : vector<18x288xf32> to vector<16x288xf32>
    %80 = vector.extract_strided_slice %78 {offsets = [1, 0], sizes = [16, 288], strides = [1, 1]} : vector<18x288xf32> to vector<16x288xf32>
    %81 = vector.extract_strided_slice %78 {offsets = [2, 0], sizes = [16, 288], strides = [1, 1]} : vector<18x288xf32> to vector<16x288xf32>
    %82 = tpu.concatenate %79, %80, %81 in 1 : vector<16x288xf32>, vector<16x288xf32>, vector<16x288xf32> -> vector<16x864xf32>
    %cst_42 = arith.constant dense<0.000000e+00> : vector<16x256xf32>
    %83 = tpu.matmul %82, %69, %cst_42 {dimension_numbers = #tpu.dot_dimension_numbers<[1], [0], [0], [1], [0, 0, 1, 1], [], []>} : vector<16x864xf32>, vector<864x256xf32>, vector<16x256xf32> -> vector<16x256xf32>
    %84 = vector.broadcast %70 : vector<1x256xf32> to vector<16x256xf32>
    %85 = arith.addf %83, %84 : vector<16x256xf32>
    %cst_43 = arith.constant dense<0.000000e+00> : vector<256xf32>
    %86 = vector.multi_reduction <add>, %85, %cst_43 [0] : vector<16x256xf32> to vector<256xf32>
    %87 = vector.shape_cast %86 : vector<256xf32> to vector<1x256xf32>
    %cst_44 = arith.constant dense<0.000000e+00> : vector<1x256xf32>
    %88 = tpu.matmul %87, %2, %cst_44 {dimension_numbers = #tpu.dot_dimension_numbers<[1], [0], [0], [1], [0, 0, 1, 1], [], []>} : vector<1x256xf32>, vector<256x256xf32>, vector<1x256xf32> -> vector<1x256xf32>
    %89 = vector.broadcast %88 : vector<1x256xf32> to vector<16x256xf32>
    %90 = arith.subf %85, %89 : vector<16x256xf32>
    %91 = arith.mulf %90, %90 : vector<16x256xf32>
    %cst_45 = arith.constant dense<0.000000e+00> : vector<256xf32>
    %92 = vector.multi_reduction <add>, %91, %cst_45 [0] : vector<16x256xf32> to vector<256xf32>
    %93 = vector.shape_cast %92 : vector<256xf32> to vector<1x256xf32>
    %cst_46 = arith.constant dense<0.000000e+00> : vector<1x256xf32>
    %94 = tpu.matmul %93, %2, %cst_46 {dimension_numbers = #tpu.dot_dimension_numbers<[1], [0], [0], [1], [0, 0, 1, 1], [], []>} : vector<1x256xf32>, vector<256x256xf32>, vector<1x256xf32> -> vector<1x256xf32>
    %cst_47 = arith.constant 9.99999974E-6 : f32
    %95 = vector.broadcast %cst_47 : f32 to vector<1x256xf32>
    %96 = arith.addf %94, %95 : vector<1x256xf32>
    %97 = math.rsqrt %96 : vector<1x256xf32>
    %98 = vector.broadcast %97 : vector<1x256xf32> to vector<16x256xf32>
    %99 = arith.mulf %90, %98 : vector<16x256xf32>
    %100 = vector.broadcast %71 : vector<1x256xf32> to vector<16x256xf32>
    %101 = arith.mulf %99, %100 : vector<16x256xf32>
    %102 = vector.broadcast %72 : vector<1x256xf32> to vector<16x256xf32>
    %103 = arith.addf %101, %102 : vector<16x256xf32>
    %cst_48 = arith.constant 2.000000e+01 : f32
    %104 = vector.broadcast %cst_48 : f32 to vector<16x256xf32>
    %105 = arith.minimumf %103, %104 : vector<16x256xf32>
    %106 = math.exp %105 : vector<16x256xf32>
    %cst_49 = arith.constant 2.000000e+00 : f32
    %107 = vector.broadcast %cst_49 : f32 to vector<16x256xf32>
    %108 = arith.addf %106, %107 : vector<16x256xf32>
    %109 = arith.mulf %106, %108 : vector<16x256xf32>
    %cst_50 = arith.constant 2.000000e+00 : f32
    %110 = vector.broadcast %cst_50 : f32 to vector<16x256xf32>
    %111 = arith.addf %109, %110 : vector<16x256xf32>
    %112 = arith.divf %109, %111 : vector<16x256xf32>
    %113 = arith.mulf %103, %112 : vector<16x256xf32>
    %c0_51 = arith.constant 0 : index
    %c0_52 = arith.constant 0 : index
    %114 = vector.load %arg15[%c0_51, %c0_52] : memref<64x256xf32, #tpu.memory_space<vmem>>, vector<64x256xf32>
    %cst_53 = arith.constant dense<0.000000e+00> : vector<16x256xf32>
    %115 = tpu.matmul %1, %114, %cst_53 {dimension_numbers = #tpu.dot_dimension_numbers<[1], [0], [0], [1], [0, 0, 1, 1], [], []>} : vector<16x64xf32>, vector<64x256xf32>, vector<16x256xf32> -> vector<16x256xf32>
    %c0_54 = arith.constant 0 : index
    %c0_55 = arith.constant 0 : index
    %116 = vector.load %arg16[%c0_54, %c0_55] : memref<1x256xf32, #tpu.memory_space<vmem>>, vector<1x256xf32>
    %117 = vector.broadcast %116 : vector<1x256xf32> to vector<16x256xf32>
    %118 = arith.addf %115, %117 : vector<16x256xf32>
    %119 = arith.addf %113, %118 : vector<16x256xf32>
    %c0_56 = arith.constant 0 : index
    %c0_57 = arith.constant 0 : index
    %c0_58 = arith.constant 0 : index
    %120 = vector.load %arg17[%c0_56, %c0_57, %c0_58] : memref<1x16x256xf32, #tpu.memory_space<vmem>>, vector<1x16x256xf32>
    %121 = vector.shape_cast %120 : vector<1x16x256xf32> to vector<16x256xf32>
    %122 = vector.shape_cast %119 : vector<16x256xf32> to vector<1x16x256xf32>
    tpu.vector_store %arg17[%c0_56, %c0_57, %c0_58], %122 {strides = array<i32>} : memref<1x16x256xf32, #tpu.memory_space<vmem>>, vector<1x16x256xf32>,
    return
  }
  func.func @transform_0(%arg0: i32) -> (i32, i32, i32) {
    %c0_i32 = arith.constant 0 : i32
    %c0_i32_0 = arith.constant 0 : i32
    %c0_i32_1 = arith.constant 0 : i32
    return %arg0, %c0_i32, %c0_i32_0 : i32, i32, i32
  }
  func.func @transform_1(%arg0: i32) -> (i32, i32, i32) {
    %c0_i32 = arith.constant 0 : i32
    %c0_i32_0 = arith.constant 0 : i32
    %c0_i32_1 = arith.constant 0 : i32
    return %arg0, %c0_i32, %c0_i32_0 : i32, i32, i32
  }
  func.func @transform_2(%arg0: i32) -> (i32, i32, i32) {
    %c0_i32 = arith.constant 0 : i32
    %c0_i32_0 = arith.constant 0 : i32
    %c0_i32_1 = arith.constant 0 : i32
    return %arg0, %c0_i32, %c0_i32_0 : i32, i32, i32
  }
  func.func @transform_3(%arg0: i32) -> (i32, i32) {
    %c0_i32 = arith.constant 0 : i32
    %c0_i32_0 = arith.constant 0 : i32
    %c0_i32_1 = arith.constant 0 : i32
    return %c0_i32, %c0_i32_0 : i32, i32
  }
  func.func @transform_4(%arg0: i32) -> (i32, i32) {
    %c0_i32 = arith.constant 0 : i32
    %c0_i32_0 = arith.constant 0 : i32
    %c0_i32_1 = arith.constant 0 : i32
    return %c0_i32, %c0_i32_0 : i32, i32
  }
  func.func @transform_5(%arg0: i32) -> (i32, i32) {
    %c0_i32 = arith.constant 0 : i32
    %c0_i32_0 = arith.constant 0 : i32
    %c0_i32_1 = arith.constant 0 : i32
    return %c0_i32, %c0_i32_0 : i32, i32
  }
  func.func @transform_6(%arg0: i32) -> (i32, i32) {
    %c0_i32 = arith.constant 0 : i32
    %c0_i32_0 = arith.constant 0 : i32
    %c0_i32_1 = arith.constant 0 : i32
    return %c0_i32, %c0_i32_0 : i32, i32
  }
  func.func @transform_7(%arg0: i32) -> (i32, i32) {
    %c0_i32 = arith.constant 0 : i32
    %c0_i32_0 = arith.constant 0 : i32
    %c0_i32_1 = arith.constant 0 : i32
    return %c0_i32, %c0_i32_0 : i32, i32
  }
  func.func @transform_8(%arg0: i32) -> (i32, i32) {
    %c0_i32 = arith.constant 0 : i32
    %c0_i32_0 = arith.constant 0 : i32
    %c0_i32_1 = arith.constant 0 : i32
    return %c0_i32, %c0_i32_0 : i32, i32
  }
  func.func @transform_9(%arg0: i32) -> (i32, i32) {
    %c0_i32 = arith.constant 0 : i32
    %c0_i32_0 = arith.constant 0 : i32
    %c0_i32_1 = arith.constant 0 : i32
    return %c0_i32, %c0_i32_0 : i32, i32
  }
  func.func @transform_10(%arg0: i32) -> (i32, i32) {
    %c0_i32 = arith.constant 0 : i32
    %c0_i32_0 = arith.constant 0 : i32
    %c0_i32_1 = arith.constant 0 : i32
    return %c0_i32, %c0_i32_0 : i32, i32
  }
  func.func @transform_11(%arg0: i32) -> (i32, i32) {
    %c0_i32 = arith.constant 0 : i32
    %c0_i32_0 = arith.constant 0 : i32
    %c0_i32_1 = arith.constant 0 : i32
    return %c0_i32, %c0_i32_0 : i32, i32
  }
  func.func @transform_12(%arg0: i32) -> (i32, i32) {
    %c0_i32 = arith.constant 0 : i32
    %c0_i32_0 = arith.constant 0 : i32
    %c0_i32_1 = arith.constant 0 : i32
    return %c0_i32, %c0_i32_0 : i32, i32
  }
  func.func @transform_13(%arg0: i32) -> (i32, i32) {
    %c0_i32 = arith.constant 0 : i32
    %c0_i32_0 = arith.constant 0 : i32
    %c0_i32_1 = arith.constant 0 : i32
    return %c0_i32, %c0_i32_0 : i32, i32
  }
  func.func @transform_14(%arg0: i32) -> (i32, i32) {
    %c0_i32 = arith.constant 0 : i32
    %c0_i32_0 = arith.constant 0 : i32
    %c0_i32_1 = arith.constant 0 : i32
    return %c0_i32, %c0_i32_0 : i32, i32
  }
  func.func @transform_15(%arg0: i32) -> (i32, i32) {
    %c0_i32 = arith.constant 0 : i32
    %c0_i32_0 = arith.constant 0 : i32
    %c0_i32_1 = arith.constant 0 : i32
    return %c0_i32, %c0_i32_0 : i32, i32
  }
  func.func @transform_16(%arg0: i32) -> (i32, i32, i32) {
    %c0_i32 = arith.constant 0 : i32
    %c0_i32_0 = arith.constant 0 : i32
    %c0_i32_1 = arith.constant 0 : i32
    return %arg0, %c0_i32, %c0_i32_0 : i32, i32, i32
  }
}

</mosaic_0001>

<llo_original>
// kernel: tpu_custom_call.1
$region0: #{tpu_custom_call.1}
  #allocation0 [shape = 'u32[]', space=smem, size = 0x4, offset = 0x4, fixed_abs, tag = 'smem constant byte address 0x4 - core index']
  #allocation1 [shape = 'u32[72,128]{1,0:T(1,128)}', space=vmem, size = 0x9000, scoped, tag = 'internal scratch']
  %s0 = inlined_call_operand.hbm [shape: f32[2,16,64], index: 0, kind: input, shape index: {}]
  %s1 = inlined_call_operand.hbm [shape: f32[2,1,8], index: 1, kind: input, shape index: {}]
  %s2 = inlined_call_operand.hbm [shape: f32[2,16,256], index: 2, kind: input, shape index: {}]
  %s3 = inlined_call_operand.hbm [shape: f32[216,256], index: 3, kind: input, shape index: {}]
  %s4 = inlined_call_operand.vmem [shape: f32[1,256], index: 4, kind: input, shape index: {}]
  %s5 = inlined_call_operand.vmem [shape: f32[1,256], index: 5, kind: input, shape index: {}]
  %s6 = inlined_call_operand.hbm [shape: f32[1,256], index: 6, kind: input, shape index: {}]
  %s7 = inlined_call_operand.hbm [shape: f32[864,256], index: 7, kind: input, shape index: {}]
  %s8 = inlined_call_operand.vmem [shape: f32[1,256], index: 8, kind: input, shape index: {}]
  %s9 = inlined_call_operand.vmem [shape: f32[1,256], index: 9, kind: input, shape index: {}]
  %s10 = inlined_call_operand.hbm [shape: f32[1,256], index: 10, kind: input, shape index: {}]
  %s11 = inlined_call_operand.hbm [shape: f32[256,256], index: 11, kind: input, shape index: {}]
  %s12 = inlined_call_operand.hbm [shape: f32[8,256], index: 12, kind: input, shape index: {}]
  %s13 = inlined_call_operand.vmem [shape: f32[1,256], index: 13, kind: input, shape index: {}]
  %s14 = inlined_call_operand.hbm [shape: f32[64,256], index: 14, kind: input, shape index: {}]
  %s15 = inlined_call_operand.vmem [shape: f32[1,256], index: 15, kind: input, shape index: {}]
  %s16 = inlined_call_operand.hbm [shape: f32[2,16,256], index: 16, kind: output, shape index: {}]
  %s17 = sld [smem:[#allocation0]]
  $region137: #{tpu_custom_call.1} parent=0
    _
  %s19 = ssub.s32 1, %s17
  %s20 = scalar_select 0, %s19, %s17
  $region1: #{tpu_custom_call.1} parent=0
    #allocation2 [shape = 'u8[16384]{0}', space=vmem, size = 0x4000, scoped, tag = 'input window, operand 0']
    #allocation3 [shape = 's32[2]{0}', space=sflag, size = 0x8, scoped, tag = 'scoped memory for tpu_custom_call.1']
    #allocation4 [shape = 's32[2]{0}', space=sflag, size = 0x8, scoped, tag = 'scoped memory for tpu_custom_call.1']
    #allocation5 [shape = 'u8[1024]{0}', space=vmem, size = 0x400, scoped, tag = 'input window, operand 1']
    #allocation6 [shape = 's32[2]{0}', space=sflag, size = 0x8, scoped, tag = 'scoped memory for tpu_custom_call.1']
    #allocation7 [shape = 'u8[32768]{0}', space=vmem, size = 0x8000, scoped, tag = 'input window, operand 2']
    #allocation8 [shape = 'u8[221184]{0}', space=vmem, size = 0x36000, scoped, tag = 'input window, operand 3, single buffered']
    #allocation9 [shape = 's32[1]{0}', space=sflag, size = 0x4, scoped, tag = 'scoped memory for tpu_custom_call.1']
    #allocation10 [shape = 'u8[1024]{0}', space=vmem, size = 0x400, scoped, tag = 'input window, operand 6, single buffered']
    #allocation11 [shape = 'u8[884736]{0}', space=vmem, size = 0xd8000, scoped, tag = 'input window, operand 7, single buffered']
    #allocation12 [shape = 's32[1]{0}', space=sflag, size = 0x4, scoped, tag = 'scoped memory for tpu_custom_call.1']
    #allocation13 [shape = 'u8[1024]{0}', space=vmem, size = 0x400, scoped, tag = 'input window, operand 10, single buffered']
    #allocation14 [shape = 'u8[262144]{0}', space=vmem, size = 0x40000, scoped, tag = 'input window, operand 11, single buffered']
    #allocation15 [shape = 's32[1]{0}', space=sflag, size = 0x4, scoped, tag = 'scoped memory for tpu_custom_call.1']
    #allocation16 [shape = 'u8[8192]{0}', space=vmem, size = 0x2000, scoped, tag = 'input window, operand 12, single buffered']
    #allocation17 [shape = 'u8[65536]{0}', space=vmem, size = 0x10000, scoped, tag = 'input window, operand 14, single buffered']
    #allocation18 [shape = 's32[1]{0}', space=sflag, size = 0x4, scoped, tag = 'scoped memory for tpu_custom_call.1']
    #allocation19 [shape = 'u8[32768]{0}', space=vmem, size = 0x8000, scoped, tag = 'output window, operand 0']
    %21 = vsyncpa [#allocation3], 0
    %s22 = scalar_lea.sflag [#allocation3], 1
    %23 = vsyncpa %s22, 0
    %24 = vsyncpa [#allocation6], 0
    %s25 = scalar_lea.sflag [#allocation6], 1
    %26 = vsyncpa %s25, 0
    %27 = vsyncpa [#allocation9], 0
    %28 = vsyncpa [#allocation12], 0
    %29 = vsyncpa [#allocation15], 0
    %30 = vsyncpa [#allocation18], 0
    %31 = vsyncpa [#allocation4], 0
    %s32 = scalar_lea.sflag [#allocation4], 1
    %33 = vsyncpa %s32, 0
    loop: start=0, step=1, limit=4
    $region2: #{tpu_custom_call.1} parent=1 // loop_pre_header
      _
    $region3: #{tpu_custom_call.1} parent=1 // loop_header
      %s35 = sphi 0, %s39
      %p36 = scmp.ge.s32.totalorder %s35, 4
      %s45 = sphi 0, %s47
      %s48 = sphi 0, %s45
      %s49 = sphi 0, %s48
      %s65 = sphi 0, %s49
      %s71 = sphi 0, %s73
      %s74 = sphi 0, %s71
      %s75 = sphi 0, %s74
      %s91 = sphi 0, %s75
      %s97 = sphi 0, %s99
      %s100 = sphi 0, %s97
      %s101 = sphi 0, %s100
      %s117 = sphi 0, %s101
      %s121 = sphi 0, %s121
      %s123 = sphi 0, %s121
      %s124 = sphi 0, %s123
      %s138 = sphi 0, %s124
      %s142 = sphi 0, %s142
      %s144 = sphi 0, %s142
      %s145 = sphi 0, %s144
      %s159 = sphi 0, %s145
      %s163 = sphi 0, %s163
      %s165 = sphi 0, %s163
      %s166 = sphi 0, %s165
      %s180 = sphi 0, %s166
      %s184 = sphi 0, %s184
      %s186 = sphi 0, %s184
      %s187 = sphi 0, %s186
      %s201 = sphi 0, %s187
      %s205 = sphi 0, %s205
      %s207 = sphi 0, %s205
      %s208 = sphi 0, %s207
      %s222 = sphi 0, %s208
      %s226 = sphi 0, %s226
      %s228 = sphi 0, %s226
      %s229 = sphi 0, %s228
      %s243 = sphi 0, %s229
      %s247 = sphi 0, %s247
      %s249 = sphi 0, %s247
      %s250 = sphi 0, %s249
      %s264 = sphi 0, %s250
      %s268 = sphi 0, %s268
      %s270 = sphi 0, %s268
      %s271 = sphi 0, %s270
      %s285 = sphi 0, %s271
      %s289 = sphi 0, %s289
      %s291 = sphi 0, %s289
      %s292 = sphi 0, %s291
      %s306 = sphi 0, %s292
      %s310 = sphi 0, %s310
      %s312 = sphi 0, %s310
      %s313 = sphi 0, %s312
      %s327 = sphi 0, %s313
      %s331 = sphi 0, %s331
      %s333 = sphi 0, %s331
      %s334 = sphi 0, %s333
      %s348 = sphi 0, %s334
      %s352 = sphi 0, %s352
      %s354 = sphi 0, %s352
      %s355 = sphi 0, %s354
      %s369 = sphi 0, %s355
      %s373 = sphi 0, %s373
      %s375 = sphi 0, %s373
      %s376 = sphi 0, %s375
      %s390 = sphi 0, %s376
      %s396 = sphi 0, %s398
      %s399 = sphi 0, %s396
      %s400 = sphi 0, %s399
      %s416 = sphi 0, %s400
    $region4: #{tpu_custom_call.1} parent=1 // loop_header_branch
      %38 = sbr.rel (%p36) target = $region8
    $region5: #{tpu_custom_call.1} parent=1 // loop_body
      %s40 = ssub.s32 %s35, 1
      %s41 = ssub.s32 %s35, 2
      %s42 = sadd.s32 %s35, 1
      %s43 = ssub.s32 %s35, %s42
      %p44 = scmp.eq.s32.totalorder %s43, 0
      %s46 = sadd.s32 %s45, 1
      %s47 = scalar_select %p44, %s45, %s46
      %p50 = pneg %p44
      %p51 = scmp.eq.s32.totalorder %s35, 1
      %p52 = por %p50, %p51
      %p53 = scmp.ne.s32.totalorder %s45, %s48
      %p54 = scmp.eq.s32.totalorder %s35, 0
      %p55 = por %p53, %p54
      %p56 = scmp.ne.s32.totalorder %s45, %s48
      %p57 = scmp.eq.s32.totalorder %s40, 1
      %p58 = por %p56, %p57
      %p59 = scmp.ne.s32.totalorder %s48, %s49
      %p60 = scmp.eq.s32.totalorder %s40, 0
      %p61 = por %p59, %p60
      %p62 = scmp.ne.s32.totalorder %s48, %s49
      %p63 = scmp.eq.s32.totalorder %s41, 1
      %p64 = por %p62, %p63
      %p66 = scmp.ne.s32.totalorder %s49, %s65
      %p67 = scmp.eq.s32.totalorder %s41, 0
      %p68 = por %p66, %p67
      %s69 = ssub.s32 %s35, %s42
      %p70 = scmp.eq.s32.totalorder %s69, 0
      %s72 = sadd.s32 %s71, 1
      %s73 = scalar_select %p70, %s71, %s72
      %p76 = pneg %p70
      %p77 = scmp.eq.s32.totalorder %s35, 1
      %p78 = por %p76, %p77
      %p79 = scmp.ne.s32.totalorder %s71, %s74
      %p80 = scmp.eq.s32.totalorder %s35, 0
      %p81 = por %p79, %p80
      %p82 = scmp.ne.s32.totalorder %s71, %s74
      %p83 = scmp.eq.s32.totalorder %s40, 1
      %p84 = por %p82, %p83
      %p85 = scmp.ne.s32.totalorder %s74, %s75
      %p86 = scmp.eq.s32.totalorder %s40, 0
      %p87 = por %p85, %p86
      %p88 = scmp.ne.s32.totalorder %s74, %s75
      %p89 = scmp.eq.s32.totalorder %s41, 1
      %p90 = por %p88, %p89
      %p92 = scmp.ne.s32.totalorder %s75, %s91
      %p93 = scmp.eq.s32.totalorder %s41, 0
      %p94 = por %p92, %p93
      %s95 = ssub.s32 %s35, %s42
      %p96 = scmp.eq.s32.totalorder %s95, 0
      %s98 = sadd.s32 %s97, 1
      %s99 = scalar_select %p96, %s97, %s98
      %p102 = pneg %p96
      %p103 = scmp.eq.s32.totalorder %s35, 1
      %p104 = por %p102, %p103
      %p105 = scmp.ne.s32.totalorder %s97, %s100
      %p106 = scmp.eq.s32.totalorder %s35, 0
      %p107 = por %p105, %p106
      %p108 = scmp.ne.s32.totalorder %s97, %s100
      %p109 = scmp.eq.s32.totalorder %s40, 1
      %p110 = por %p108, %p109
      %p111 = scmp.ne.s32.totalorder %s100, %s101
      %p112 = scmp.eq.s32.totalorder %s40, 0
      %p113 = por %p111, %p112
      %p114 = scmp.ne.s32.totalorder %s100, %s101
      %p115 = scmp.eq.s32.totalorder %s41, 1
      %p116 = por %p114, %p115
      %p118 = scmp.ne.s32.totalorder %s101, %s117
      %p119 = scmp.eq.s32.totalorder %s41, 0
      %p120 = por %p118, %p119
      %s122 = sadd.s32 %s121, 1
      %p125 = scmp.eq.s32.totalorder %s35, 1
      %p126 = scmp.ne.s32.totalorder %s121, %s123
      %p127 = scmp.eq.s32.totalorder %s35, 0
      %p128 = por %p126, %p127
      %p129 = scmp.ne.s32.totalorder %s121, %s123
      %p130 = scmp.eq.s32.totalorder %s40, 1
      %p131 = por %p129, %p130
      %p132 = scmp.ne.s32.totalorder %s123, %s124
      %p133 = scmp.eq.s32.totalorder %s40, 0
      %p134 = por %p132, %p133
      %p135 = scmp.ne.s32.totalorder %s123, %s124
      %p136 = scmp.eq.s32.totalorder %s41, 1
      %p137 = por %p135, %p136
      %p139 = scmp.ne.s32.totalorder %s124, %s138
      %p140 = scmp.eq.s32.totalorder %s41, 0
      %p141 = por %p139, %p140
      %s143 = sadd.s32 %s142, 1
      %p146 = scmp.eq.s32.totalorder %s35, 1
      %p147 = scmp.ne.s32.totalorder %s142, %s144
      %p148 = scmp.eq.s32.totalorder %s35, 0
      %p149 = por %p147, %p148
      %p150 = scmp.ne.s32.totalorder %s142, %s144
      %p151 = scmp.eq.s32.totalorder %s40, 1
      %p152 = por %p150, %p151
      %p153 = scmp.ne.s32.totalorder %s144, %s145
      %p154 = scmp.eq.s32.totalorder %s40, 0
      %p155 = por %p153, %p154
      %p156 = scmp.ne.s32.totalorder %s144, %s145
      %p157 = scmp.eq.s32.totalorder %s41, 1
      %p158 = por %p156, %p157
      %p160 = scmp.ne.s32.totalorder %s145, %s159
      %p161 = scmp.eq.s32.totalorder %s41, 0
      %p162 = por %p160, %p161
      %s164 = sadd.s32 %s163, 1
      %p167 = scmp.eq.s32.totalorder %s35, 1
      %p168 = scmp.ne.s32.totalorder %s163, %s165
      %p169 = scmp.eq.s32.totalorder %s35, 0
      %p170 = por %p168, %p169
      %p171 = scmp.ne.s32.totalorder %s163, %s165
      %p172 = scmp.eq.s32.totalorder %s40, 1
      %p173 = por %p171, %p172
      %p174 = scmp.ne.s32.totalorder %s165, %s166
      %p175 = scmp.eq.s32.totalorder %s40, 0
      %p176 = por %p174, %p175
      %p177 = scmp.ne.s32.totalorder %s165, %s166
      %p178 = scmp.eq.s32.totalorder %s41, 1
      %p179 = por %p177, %p178
      %p181 = scmp.ne.s32.totalorder %s166, %s180
      %p182 = scmp.eq.s32.totalorder %s41, 0
      %p183 = por %p181, %p182
      %s185 = sadd.s32 %s184, 1
      %p188 = scmp.eq.s32.totalorder %s35, 1
      %p189 = scmp.ne.s32.totalorder %s184, %s186
      %p190 = scmp.eq.s32.totalorder %s35, 0
      %p191 = por %p189, %p190
      %p192 = scmp.ne.s32.totalorder %s184, %s186
      %p193 = scmp.eq.s32.totalorder %s40, 1
      %p194 = por %p192, %p193
      %p195 = scmp.ne.s32.totalorder %s186, %s187
      %p196 = scmp.eq.s32.totalorder %s40, 0
      %p197 = por %p195, %p196
      %p198 = scmp.ne.s32.totalorder %s186, %s187
      %p199 = scmp.eq.s32.totalorder %s41, 1
      %p200 = por %p198, %p199
      %p202 = scmp.ne.s32.totalorder %s187, %s201
      %p203 = scmp.eq.s32.totalorder %s41, 0
      %p204 = por %p202, %p203
      %s206 = sadd.s32 %s205, 1
      %p209 = scmp.eq.s32.totalorder %s35, 1
      %p210 = scmp.ne.s32.totalorder %s205, %s207
      %p211 = scmp.eq.s32.totalorder %s35, 0
      %p212 = por %p210, %p211
      %p213 = scmp.ne.s32.totalorder %s205, %s207
      %p214 = scmp.eq.s32.totalorder %s40, 1
      %p215 = por %p213, %p214
      %p216 = scmp.ne.s32.totalorder %s207, %s208
      %p217 = scmp.eq.s32.totalorder %s40, 0
      %p218 = por %p216, %p217
      %p219 = scmp.ne.s32.totalorder %s207, %s208
      %p220 = scmp.eq.s32.totalorder %s41, 1
      %p221 = por %p219, %p220
      %p223 = scmp.ne.s32.totalorder %s208, %s222
      %p224 = scmp.eq.s32.totalorder %s41, 0
      %p225 = por %p223, %p224
      %s227 = sadd.s32 %s226, 1
      %p230 = scmp.eq.s32.totalorder %s35, 1
      %p231 = scmp.ne.s32.totalorder %s226, %s228
      %p232 = scmp.eq.s32.totalorder %s35, 0
      %p233 = por %p231, %p232
      %p234 = scmp.ne.s32.totalorder %s226, %s228
      %p235 = scmp.eq.s32.totalorder %s40, 1
      %p236 = por %p234, %p235
      %p237 = scmp.ne.s32.totalorder %s228, %s229
      %p238 = scmp.eq.s32.totalorder %s40, 0
      %p239 = por %p237, %p238
      %p240 = scmp.ne.s32.totalorder %s228, %s229
      %p241 = scmp.eq.s32.totalorder %s41, 1
      %p242 = por %p240, %p241
      %p244 = scmp.ne.s32.totalorder %s229, %s243
      %p245 = scmp.eq.s32.totalorder %s41, 0
      %p246 = por %p244, %p245
      %s248 = sadd.s32 %s247, 1
      %p251 = scmp.eq.s32.totalorder %s35, 1
      %p252 = scmp.ne.s32.totalorder %s247, %s249
      %p253 = scmp.eq.s32.totalorder %s35, 0
      %p254 = por %p252, %p253
      %p255 = scmp.ne.s32.totalorder %s247, %s249
      %p256 = scmp.eq.s32.totalorder %s40, 1
      %p257 = por %p255, %p256
      %p258 = scmp.ne.s32.totalorder %s249, %s250
      %p259 = scmp.eq.s32.totalorder %s40, 0
      %p260 = por %p258, %p259
      %p261 = scmp.ne.s32.totalorder %s249, %s250
      %p262 = scmp.eq.s32.totalorder %s41, 1
      %p263 = por %p261, %p262
      %p265 = scmp.ne.s32.totalorder %s250, %s264
      %p266 = scmp.eq.s32.totalorder %s41, 0
      %p267 = por %p265, %p266
      %s269 = sadd.s32 %s268, 1
      %p272 = scmp.eq.s32.totalorder %s35, 1
      %p273 = scmp.ne.s32.totalorder %s268, %s270
      %p274 = scmp.eq.s32.totalorder %s35, 0
      %p275 = por %p273, %p274
      %p276 = scmp.ne.s32.totalorder %s268, %s270
      %p277 = scmp.eq.s32.totalorder %s40, 1
      %p278 = por %p276, %p277
      %p279 = scmp.ne.s32.totalorder %s270, %s271
      %p280 = scmp.eq.s32.totalorder %s40, 0
      %p281 = por %p279, %p280
      %p282 = scmp.ne.s32.totalorder %s270, %s271
      %p283 = scmp.eq.s32.totalorder %s41, 1
      %p284 = por %p282, %p283
      %p286 = scmp.ne.s32.totalorder %s271, %s285
      %p287 = scmp.eq.s32.totalorder %s41, 0
      %p288 = por %p286, %p287
      %s290 = sadd.s32 %s289, 1
      %p293 = scmp.eq.s32.totalorder %s35, 1
      %p294 = scmp.ne.s32.totalorder %s289, %s291
      %p295 = scmp.eq.s32.totalorder %s35, 0
      %p296 = por %p294, %p295
      %p297 = scmp.ne.s32.totalorder %s289, %s291
      %p298 = scmp.eq.s32.totalorder %s40, 1
      %p299 = por %p297, %p298
      %p300 = scmp.ne.s32.totalorder %s291, %s292
      %p301 = scmp.eq.s32.totalorder %s40, 0
      %p302 = por %p300, %p301
      %p303 = scmp.ne.s32.totalorder %s291, %s292
      %p304 = scmp.eq.s32.totalorder %s41, 1
      %p305 = por %p303, %p304
      %p307 = scmp.ne.s32.totalorder %s292, %s306
      %p308 = scmp.eq.s32.totalorder %s41, 0
      %p309 = por %p307, %p308
      %s311 = sadd.s32 %s310, 1
      %p314 = scmp.eq.s32.totalorder %s35, 1
      %p315 = scmp.ne.s32.totalorder %s310, %s312
      %p316 = scmp.eq.s32.totalorder %s35, 0
      %p317 = por %p315, %p316
      %p318 = scmp.ne.s32.totalorder %s310, %s312
      %p319 = scmp.eq.s32.totalorder %s40, 1
      %p320 = por %p318, %p319
      %p321 = scmp.ne.s32.totalorder %s312, %s313
      %p322 = scmp.eq.s32.totalorder %s40, 0
      %p323 = por %p321, %p322
      %p324 = scmp.ne.s32.totalorder %s312, %s313
      %p325 = scmp.eq.s32.totalorder %s41, 1
      %p326 = por %p324, %p325
      %p328 = scmp.ne.s32.totalorder %s313, %s327
      %p329 = scmp.eq.s32.totalorder %s41, 0
      %p330 = por %p328, %p329
      %s332 = sadd.s32 %s331, 1
      %p335 = scmp.eq.s32.totalorder %s35, 1
      %p336 = scmp.ne.s32.totalorder %s331, %s333
      %p337 = scmp.eq.s32.totalorder %s35, 0
      %p338 = por %p336, %p337
      %p339 = scmp.ne.s32.totalorder %s331, %s333
      %p340 = scmp.eq.s32.totalorder %s40, 1
      %p341 = por %p339, %p340
      %p342 = scmp.ne.s32.totalorder %s333, %s334
      %p343 = scmp.eq.s32.totalorder %s40, 0
      %p344 = por %p342, %p343
      %p345 = scmp.ne.s32.totalorder %s333, %s334
      %p346 = scmp.eq.s32.totalorder %s41, 1
      %p347 = por %p345, %p346
      %p349 = scmp.ne.s32.totalorder %s334, %s348
      %p350 = scmp.eq.s32.totalorder %s41, 0
      %p351 = por %p349, %p350
      %s353 = sadd.s32 %s352, 1
      %p356 = scmp.eq.s32.totalorder %s35, 1
      %p357 = scmp.ne.s32.totalorder %s352, %s354
      %p358 = scmp.eq.s32.totalorder %s35, 0
      %p359 = por %p357, %p358
      %p360 = scmp.ne.s32.totalorder %s352, %s354
      %p361 = scmp.eq.s32.totalorder %s40, 1
      %p362 = por %p360, %p361
      %p363 = scmp.ne.s32.totalorder %s354, %s355
      %p364 = scmp.eq.s32.totalorder %s40, 0
      %p365 = por %p363, %p364
      %p366 = scmp.ne.s32.totalorder %s354, %s355
      %p367 = scmp.eq.s32.totalorder %s41, 1
      %p368 = por %p366, %p367
      %p370 = scmp.ne.s32.totalorder %s355, %s369
      %p371 = scmp.eq.s32.totalorder %s41, 0
      %p372 = por %p370, %p371
      %s374 = sadd.s32 %s373, 1
      %p377 = scmp.eq.s32.totalorder %s35, 1
      %p378 = scmp.ne.s32.totalorder %s373, %s375
      %p379 = scmp.eq.s32.totalorder %s35, 0
      %p380 = por %p378, %p379
      %p381 = scmp.ne.s32.totalorder %s373, %s375
      %p382 = scmp.eq.s32.totalorder %s40, 1
      %p383 = por %p381, %p382
      %p384 = scmp.ne.s32.totalorder %s375, %s376
      %p385 = scmp.eq.s32.totalorder %s40, 0
      %p386 = por %p384, %p385
      %p387 = scmp.ne.s32.totalorder %s375, %s376
      %p388 = scmp.eq.s32.totalorder %s41, 1
      %p389 = por %p387, %p388
      %p391 = scmp.ne.s32.totalorder %s376, %s390
      %p392 = scmp.eq.s32.totalorder %s41, 0
      %p393 = por %p391, %p392
      %s394 = ssub.s32 %s35, %s42
      %p395 = scmp.eq.s32.totalorder %s394, 0
      %s397 = sadd.s32 %s396, 1
      %s398 = scalar_select %p395, %s396, %s397
      %p401 = pneg %p395
      %p402 = scmp.eq.s32.totalorder %s35, 1
      %p403 = por %p401, %p402
      %p404 = scmp.ne.s32.totalorder %s396, %s399
      %p405 = scmp.eq.s32.totalorder %s35, 0
      %p406 = por %p404, %p405
      %p407 = scmp.ne.s32.totalorder %s396, %s399
      %p408 = scmp.eq.s32.totalorder %s40, 1
      %p409 = por %p407, %p408
      %p410 = scmp.ne.s32.totalorder %s399, %s400
      %p411 = scmp.eq.s32.totalorder %s40, 0
      %p412 = por %p410, %p411
      %p413 = scmp.ne.s32.totalorder %s399, %s400
      %p414 = scmp.eq.s32.totalorder %s41, 1
      %p415 = por %p413, %p414
      %p417 = scmp.ne.s32.totalorder %s400, %s416
      %p418 = scmp.eq.s32.totalorder %s41, 0
      %p419 = por %p417, %p418
      %p420 = scmp.le.s32.totalorder 1, %s35
      %p421 = scmp.lt.s32.totalorder %s35, 3
      %p422 = pnand %p420, %p421
      %p423 = pneg %p422
      // Predicated region
      $region9: #{tpu_custom_call.1} parent=5 // pred_check
        _
      $region10: #{tpu_custom_call.1} parent=5 // pred_check_branch
        %425 = sbr.rel (%p422) target = $region12
      $region11: #{tpu_custom_call.1} parent=5 // pred_region
        %s426 = ssub.s32 %s35, 1
        // Predicated region
        $region13: #{tpu_custom_call.1} parent=11 // pred_check
          %p427 = pneg %p134
        $region14: #{tpu_custom_call.1} parent=11 // pred_check_branch
          %429 = sbr.rel (%p427) target = $region16
        $region15: #{tpu_custom_call.1} parent=11 // pred_region
          %431 = vsyncadd [#allocation9], 0
          %s432 = sshll.u32 %s3, 4
          %s433 = int_to_ptr.hbm [resolvable:$true] %s432
          %s434 = sshll.u32 [#allocation8], 4
          %s435 = int_to_ptr.vmem [resolvable:$true] %s434
          %440 = dma.hbm_to_vmem [thread:$0]  %s433, 6912, %s435, [#allocation9], 256, 256, 16
        $region16: #{tpu_custom_call.1} parent=11 // pred_fallthru
          _
        // Predicated region
        $region17: #{tpu_custom_call.1} parent=11 // pred_check
          %p441 = pneg %p155
        $region18: #{tpu_custom_call.1} parent=11 // pred_check_branch
          %443 = sbr.rel (%p441) target = $region20
        $region19: #{tpu_custom_call.1} parent=11 // pred_region
          _
        $region20: #{tpu_custom_call.1} parent=11 // pred_fallthru
          _
        // Predicated region
        $region21: #{tpu_custom_call.1} parent=11 // pred_check
          %p444 = pneg %p176
        $region22: #{tpu_custom_call.1} parent=11 // pred_check_branch
          %446 = sbr.rel (%p444) target = $region24
        $region23: #{tpu_custom_call.1} parent=11 // pred_region
          _
        $region24: #{tpu_custom_call.1} parent=11 // pred_fallthru
          _
        // Predicated region
        $region25: #{tpu_custom_call.1} parent=11 // pred_check
          %p447 = pneg %p197
        $region26: #{tpu_custom_call.1} parent=11 // pred_check_branch
          %449 = sbr.rel (%p447) target = $region28
        $region27: #{tpu_custom_call.1} parent=11 // pred_region
          %451 = vsyncadd [#allocation9], 0
          %s453 = sshll.u32 %s6, 4
          %s454 = int_to_ptr.hbm [resolvable:$true] %s453
          %s455 = sshll.u32 [#allocation10], 4
          %s456 = int_to_ptr.vmem [resolvable:$true] %s455
          %458 = dma.hbm_to_vmem [thread:$0]  %s454, 32, %s456, [#allocation9]
        $region28: #{tpu_custom_call.1} parent=11 // pred_fallthru
          _
        // Predicated region
        $region29: #{tpu_custom_call.1} parent=11 // pred_check
          %p459 = pneg %p218
        $region30: #{tpu_custom_call.1} parent=11 // pred_check_branch
          %461 = sbr.rel (%p459) target = $region32
        $region31: #{tpu_custom_call.1} parent=11 // pred_region
          %463 = vsyncadd [#allocation12], 0
          %s464 = sshll.u32 %s7, 4
          %s465 = int_to_ptr.hbm [resolvable:$true] %s464
          %s466 = sshll.u32 [#allocation11], 4
          %s467 = int_to_ptr.vmem [resolvable:$true] %s466
          %472 = dma.hbm_to_vmem [thread:$0]  %s465, 27648, %s467, [#allocation12], 256, 256, 16
        $region32: #{tpu_custom_call.1} parent=11 // pred_fallthru
          _
        // Predicated region
        $region33: #{tpu_custom_call.1} parent=11 // pred_check
          %p473 = pneg %p239
        $region34: #{tpu_custom_call.1} parent=11 // pred_check_branch
          %475 = sbr.rel (%p473) target = $region36
        $region35: #{tpu_custom_call.1} parent=11 // pred_region
          _
        $region36: #{tpu_custom_call.1} parent=11 // pred_fallthru
          _
        // Predicated region
        $region37: #{tpu_custom_call.1} parent=11 // pred_check
          %p476 = pneg %p260
        $region38: #{tpu_custom_call.1} parent=11 // pred_check_branch
          %478 = sbr.rel (%p476) target = $region40
        $region39: #{tpu_custom_call.1} parent=11 // pred_region
          _
        $region40: #{tpu_custom_call.1} parent=11 // pred_fallthru
          _
        // Predicated region
        $region41: #{tpu_custom_call.1} parent=11 // pred_check
          %p479 = pneg %p281
        $region42: #{tpu_custom_call.1} parent=11 // pred_check_branch
          %481 = sbr.rel (%p479) target = $region44
        $region43: #{tpu_custom_call.1} parent=11 // pred_region
          %483 = vsyncadd [#allocation12], 0
          %s485 = sshll.u32 %s10, 4
          %s486 = int_to_ptr.hbm [resolvable:$true] %s485
          %s487 = sshll.u32 [#allocation13], 4
          %s488 = int_to_ptr.vmem [resolvable:$true] %s487
          %490 = dma.hbm_to_vmem [thread:$0]  %s486, 32, %s488, [#allocation12]
        $region44: #{tpu_custom_call.1} parent=11 // pred_fallthru
          _
        // Predicated region
        $region45: #{tpu_custom_call.1} parent=11 // pred_check
          %p491 = pneg %p302
        $region46: #{tpu_custom_call.1} parent=11 // pred_check_branch
          %493 = sbr.rel (%p491) target = $region48
        $region47: #{tpu_custom_call.1} parent=11 // pred_region
          %495 = vsyncadd [#allocation15], 0
          %s496 = sshll.u32 %s11, 4
          %s497 = int_to_ptr.hbm [resolvable:$true] %s496
          %s498 = sshll.u32 [#allocation14], 4
          %s499 = int_to_ptr.vmem [resolvable:$true] %s498
          %504 = dma.hbm_to_vmem [thread:$0]  %s497, 8192, %s499, [#allocation15], 256, 256, 16
        $region48: #{tpu_custom_call.1} parent=11 // pred_fallthru
          _
        // Predicated region
        $region49: #{tpu_custom_call.1} parent=11 // pred_check
          %p505 = pneg %p323
        $region50: #{tpu_custom_call.1} parent=11 // pred_check_branch
          %507 = sbr.rel (%p505) target = $region52
        $region51: #{tpu_custom_call.1} parent=11 // pred_region
          %509 = vsyncadd [#allocation15], 0
          %s511 = sshll.u32 %s12, 4
          %s512 = int_to_ptr.hbm [resolvable:$true] %s511
          %s513 = sshll.u32 [#allocation16], 4
          %s514 = int_to_ptr.vmem [resolvable:$true] %s513
          %516 = dma.hbm_to_vmem [thread:$0]  %s512, 256, %s514, [#allocation15]
        $region52: #{tpu_custom_call.1} parent=11 // pred_fallthru
          _
        // Predicated region
        $region53: #{tpu_custom_call.1} parent=11 // pred_check
          %p517 = pneg %p344
        $region54: #{tpu_custom_call.1} parent=11 // pred_check_branch
          %519 = sbr.rel (%p517) target = $region56
        $region55: #{tpu_custom_call.1} parent=11 // pred_region
          _
        $region56: #{tpu_custom_call.1} parent=11 // pred_fallthru
          _
        // Predicated region
        $region57: #{tpu_custom_call.1} parent=11 // pred_check
          %p520 = pneg %p365
        $region58: #{tpu_custom_call.1} parent=11 // pred_check_branch
          %522 = sbr.rel (%p520) target = $region60
        $region59: #{tpu_custom_call.1} parent=11 // pred_region
          %524 = vsyncadd [#allocation18], 0
          %s525 = sshll.u32 %s14, 4
          %s526 = int_to_ptr.hbm [resolvable:$true] %s525
          %s527 = sshll.u32 [#allocation17], 4
          %s528 = int_to_ptr.vmem [resolvable:$true] %s527
          %533 = dma.hbm_to_vmem [thread:$0]  %s526, 2048, %s528, [#allocation18], 256, 256, 16
        $region60: #{tpu_custom_call.1} parent=11 // pred_fallthru
          _
        // Predicated region
        $region61: #{tpu_custom_call.1} parent=11 // pred_check
          %p534 = pneg %p386
        $region62: #{tpu_custom_call.1} parent=11 // pred_check_branch
          %536 = sbr.rel (%p534) target = $region64
        $region63: #{tpu_custom_call.1} parent=11 // pred_region
          _
        $region64: #{tpu_custom_call.1} parent=11 // pred_fallthru
          _
      $region12: #{tpu_custom_call.1} parent=5 // pred_fallthru
        _
      %p537 = scmp.lt.s32.totalorder %s35, 2
      // Predicated region
      $region65: #{tpu_custom_call.1} parent=5 // pred_check
        %p538 = pneg %p537
      $region66: #{tpu_custom_call.1} parent=5 // pred_check_branch
        %540 = sbr.rel (%p538) target = $region68
      $region67: #{tpu_custom_call.1} parent=5 // pred_region
        // Predicated region
        $region69: #{tpu_custom_call.1} parent=67 // pred_check
          %p541 = pneg %p55
        $region70: #{tpu_custom_call.1} parent=67 // pred_check_branch
          %543 = sbr.rel (%p541) target = $region72
        $region71: #{tpu_custom_call.1} parent=67 // pred_region
          %s544 = sand.u32 %s45, 1
          %s545 = scalar_lea.sflag [#allocation3], %s544
          %s546 = sand.u32 %s45, 1
          %s547 = smul.addr %s546, 16
          %s548 = scalar_lea.vmem [#allocation2], %s547
          %550 = vsyncadd %s545, 0
          %s551 = smul.addr %s35, 2
          %s552 = smul.addr %s551, 8
          %s553 = scalar_lea.hbm %s0, %s552
          %s554 = sshll.u32 %s553, 4
          %s555 = int_to_ptr.hbm [resolvable:$true] %s554
          %s556 = sshll.u32 %s548, 4
          %s557 = int_to_ptr.vmem [resolvable:$true] %s556
          %562 = dma.hbm_to_vmem [thread:$0]  %s555, 256, %s557, %s545, 128, 128, 8
        $region72: #{tpu_custom_call.1} parent=67 // pred_fallthru
          _
        // Predicated region
        $region73: #{tpu_custom_call.1} parent=67 // pred_check
          %p563 = pneg %p81
        $region74: #{tpu_custom_call.1} parent=67 // pred_check_branch
          %565 = sbr.rel (%p563) target = $region76
        $region75: #{tpu_custom_call.1} parent=67 // pred_region
          %s566 = sand.u32 %s35, 1
          %s567 = scalar_lea.sflag [#allocation6], %s566
          %s568 = sand.u32 %s71, 1
          %s569 = scalar_lea.vmem [#allocation5], %s568
          %571 = vsyncadd %s567, 0
          %s572 = scalar_lea.hbm %s1, %s35
          %s574 = sshll.u32 %s572, 4
          %s575 = int_to_ptr.hbm [resolvable:$true] %s574
          %s576 = sshll.u32 %s569, 4
          %s577 = int_to_ptr.vmem [resolvable:$true] %s576
          %579 = dma.hbm_to_vmem [thread:$0]  %s575, 16, %s577, %s567
        $region76: #{tpu_custom_call.1} parent=67 // pred_fallthru
          _
        // Predicated region
        $region77: #{tpu_custom_call.1} parent=67 // pred_check
          %p580 = pneg %p107
        $region78: #{tpu_custom_call.1} parent=67 // pred_check_branch
          %582 = sbr.rel (%p580) target = $region80
        $region79: #{tpu_custom_call.1} parent=67 // pred_region
          %s583 = sand.u32 %s35, 1
          %s584 = scalar_lea.sflag [#allocation6], %s583
          %s585 = sand.u32 %s97, 1
          %s586 = smul.addr %s585, 32
          %s587 = scalar_lea.vmem [#allocation7], %s586
          %589 = vsyncadd %s584, 0
          %s590 = smul.addr %s35, 4
          %s591 = smul.addr %s590, 8
          %s592 = scalar_lea.hbm %s2, %s591
          %s593 = sshll.u32 %s592, 4
          %s594 = int_to_ptr.hbm [resolvable:$true] %s593
          %s595 = sshll.u32 %s587, 4
          %s596 = int_to_ptr.vmem [resolvable:$true] %s595
          %601 = dma.hbm_to_vmem [thread:$0]  %s594, 512, %s596, %s584, 256, 256, 16
        $region80: #{tpu_custom_call.1} parent=67 // pred_fallthru
          _
      $region68: #{tpu_custom_call.1} parent=5 // pred_fallthru
        _
      %p602 = scmp.le.s32.totalorder 1, %s35
      %p603 = scmp.lt.s32.totalorder %s35, 3
      %p604 = pnand %p602, %p603
      %p605 = pneg %p604
      // Predicated region
      $region81: #{tpu_custom_call.1} parent=5 // pred_check
        _
      $region82: #{tpu_custom_call.1} parent=5 // pred_check_branch
        %607 = sbr.rel (%p604) target = $region84
      $region83: #{tpu_custom_call.1} parent=5 // pred_region
        %s608 = ssub.s32 %s35, 1
        %s609 = sand.u32 %s48, 1
        %s610 = scalar_lea.sflag [#allocation3], %s609
        %s611 = sand.u32 %s48, 1
        %s612 = smul.addr %s611, 16
        %s613 = scalar_lea.vmem [#allocation2], %s612
        // Predicated region
        $region85: #{tpu_custom_call.1} parent=83 // pred_check
          %p614 = pneg %p61
        $region86: #{tpu_custom_call.1} parent=83 // pred_check_branch
          %616 = sbr.rel (%p614) target = $region88
        $region87: #{tpu_custom_call.1} parent=83 // pred_region
          %618 = dma.done %s610, 256
        $region88: #{tpu_custom_call.1} parent=83 // pred_fallthru
          _
        %s619 = sand.u32 %s40, 1
        %s620 = scalar_lea.sflag [#allocation6], %s619
        %s621 = sand.u32 %s74, 1
        %s622 = scalar_lea.vmem [#allocation5], %s621
        // Predicated region
        $region89: #{tpu_custom_call.1} parent=83 // pred_check
          %p623 = pneg %p87
        $region90: #{tpu_custom_call.1} parent=83 // pred_check_branch
          %625 = sbr.rel (%p623) target = $region92
        $region91: #{tpu_custom_call.1} parent=83 // pred_region
          %627 = dma.done %s620, 16
        $region92: #{tpu_custom_call.1} parent=83 // pred_fallthru
          _
        %s628 = sand.u32 %s40, 1
        %s629 = scalar_lea.sflag [#allocation6], %s628
        %s630 = sand.u32 %s100, 1
        %s631 = smul.addr %s630, 32
        %s632 = scalar_lea.vmem [#allocation7], %s631
        // Predicated region
        $region93: #{tpu_custom_call.1} parent=83 // pred_check
          %p633 = pneg %p113
        $region94: #{tpu_custom_call.1} parent=83 // pred_check_branch
          %635 = sbr.rel (%p633) target = $region96
        $region95: #{tpu_custom_call.1} parent=83 // pred_region
          %637 = dma.done %s629, 512
        $region96: #{tpu_custom_call.1} parent=83 // pred_fallthru
          _
        // Predicated region
        $region97: #{tpu_custom_call.1} parent=83 // pred_check
          %p638 = pneg %p134
        $region98: #{tpu_custom_call.1} parent=83 // pred_check_branch
          %640 = sbr.rel (%p638) target = $region100
        $region99: #{tpu_custom_call.1} parent=83 // pred_region
          %642 = dma.done [#allocation9], 6912
        $region100: #{tpu_custom_call.1} parent=83 // pred_fallthru
          _
        // Predicated region
        $region101: #{tpu_custom_call.1} parent=83 // pred_check
          %p643 = pneg %p197
        $region102: #{tpu_custom_call.1} parent=83 // pred_check_branch
          %645 = sbr.rel (%p643) target = $region104
        $region103: #{tpu_custom_call.1} parent=83 // pred_region
          %647 = dma.done [#allocation9], 32
        $region104: #{tpu_custom_call.1} parent=83 // pred_fallthru
          _
        // Predicated region
        $region105: #{tpu_custom_call.1} parent=83 // pred_check
          %p648 = pneg %p218
        $region106: #{tpu_custom_call.1} parent=83 // pred_check_branch
          %650 = sbr.rel (%p648) target = $region108
        $region107: #{tpu_custom_call.1} parent=83 // pred_region
          %652 = dma.done [#allocation12], 27648
        $region108: #{tpu_custom_call.1} parent=83 // pred_fallthru
          _
        // Predicated region
        $region109: #{tpu_custom_call.1} parent=83 // pred_check
          %p653 = pneg %p281
        $region110: #{tpu_custom_call.1} parent=83 // pred_check_branch
          %655 = sbr.rel (%p653) target = $region112
        $region111: #{tpu_custom_call.1} parent=83 // pred_region
          %657 = dma.done [#allocation12], 32
        $region112: #{tpu_custom_call.1} parent=83 // pred_fallthru
          _
        // Predicated region
        $region113: #{tpu_custom_call.1} parent=83 // pred_check
          %p658 = pneg %p302
        $region114: #{tpu_custom_call.1} parent=83 // pred_check_branch
          %660 = sbr.rel (%p658) target = $region116
        $region115: #{tpu_custom_call.1} parent=83 // pred_region
          %662 = dma.done [#allocation15], 8192
        $region116: #{tpu_custom_call.1} parent=83 // pred_fallthru
          _
        // Predicated region
        $region117: #{tpu_custom_call.1} parent=83 // pred_check
          %p663 = pneg %p323
        $region118: #{tpu_custom_call.1} parent=83 // pred_check_branch
          %665 = sbr.rel (%p663) target = $region120
        $region119: #{tpu_custom_call.1} parent=83 // pred_region
          %667 = dma.done [#allocation15], 256
        $region120: #{tpu_custom_call.1} parent=83 // pred_fallthru
          _
        // Predicated region
        $region121: #{tpu_custom_call.1} parent=83 // pred_check
          %p668 = pneg %p365
        $region122: #{tpu_custom_call.1} parent=83 // pred_check_branch
          %670 = sbr.rel (%p668) target = $region124
        $region123: #{tpu_custom_call.1} parent=83 // pred_region
          %672 = dma.done [#allocation18], 2048
        $region124: #{tpu_custom_call.1} parent=83 // pred_fallthru
          _
        %s673 = sand.u32 %s48, 1
        %s674 = scalar_lea.sflag [#allocation3], %s673
        %s675 = sand.u32 %s48, 1
        %s676 = smul.addr %s675, 16
        %s677 = scalar_lea.vmem [#allocation2], %s676
        %p678 = pneg %p61
        %p679 = pneg %p58
        %s680 = sand.u32 %s40, 1
        %s681 = scalar_lea.sflag [#allocation6], %s680
        %s682 = sand.u32 %s74, 1
        %s683 = scalar_lea.vmem [#allocation5], %s682
        %p684 = pneg %p87
        %p685 = pneg %p84
        %s686 = sand.u32 %s40, 1
        %s687 = scalar_lea.sflag [#allocation6], %s686
        %s688 = sand.u32 %s100, 1
        %s689 = smul.addr %s688, 32
        %s690 = scalar_lea.vmem [#allocation7], %s689
        %p691 = pneg %p113
        %p692 = pneg %p110
        %p693 = pneg %p134
        %p694 = pneg %p131
        %p695 = pneg %p155
        %p696 = pneg %p152
        %p697 = pneg %p176
        %p698 = pneg %p173
        %p699 = pneg %p197
        %p700 = pneg %p194
        %p701 = pneg %p218
        %p702 = pneg %p215
        %p703 = pneg %p239
        %p704 = pneg %p236
        %p705 = pneg %p260
        %p706 = pneg %p257
        %p707 = pneg %p281
        %p708 = pneg %p278
        %p709 = pneg %p302
        %p710 = pneg %p299
        %p711 = pneg %p323
        %p712 = pneg %p320
        %p713 = pneg %p344
        %p714 = pneg %p341
        %p715 = pneg %p365
        %p716 = pneg %p362
        %p717 = pneg %p386
        %p718 = pneg %p383
        %p719 = pneg %p412
        %p720 = pneg %p409
        %s721 = sand.u32 %s399, 1
        %s722 = scalar_lea.sflag [#allocation4], %s721
        %s723 = sand.u32 %s399, 1
        %s724 = smul.addr %s723, 32
        %s725 = scalar_lea.vmem [#allocation19], %s724
        %v726 = vld [vmem:[%s613] sm:$0xff]
        %v727 = vld [vmem:[%s613 + $0x8] sm:$0xff]
        %v728 = vld [vmem:[#allocation14] sm:$0xff]
        %v729 = vld [vmem:[#allocation14 + $0x8] sm:$0xff]
        %v730 = vld [vmem:[#allocation14 + $0x10] sm:$0xff]
        %v731 = vld [vmem:[#allocation14 + $0x18] sm:$0xff]
        %v732 = vld [vmem:[#allocation14 + $0x20] sm:$0xff]
        %v733 = vld [vmem:[#allocation14 + $0x28] sm:$0xff]
        %v734 = vld [vmem:[#allocation14 + $0x30] sm:$0xff]
        %v735 = vld [vmem:[#allocation14 + $0x38] sm:$0xff]
        %v736 = vld [vmem:[#allocation14 + $0x40] sm:$0xff]
        %v737 = vld [vmem:[#allocation14 + $0x48] sm:$0xff]
        %v738 = vld [vmem:[#allocation14 + $0x50] sm:$0xff]
        %v739 = vld [vmem:[#allocation14 + $0x58] sm:$0xff]
        %v740 = vld [vmem:[#allocation14 + $0x60] sm:$0xff]
        %v741 = vld [vmem:[#allocation14 + $0x68] sm:$0xff]
        %v742 = vld [vmem:[#allocation14 + $0x70] sm:$0xff]
        %v743 = vld [vmem:[#allocation14 + $0x78] sm:$0xff]
        %v744 = vld [vmem:[#allocation14 + $0x80] sm:$0xff]
        %v745 = vld [vmem:[#allocation14 + $0x88] sm:$0xff]
        %v746 = vld [vmem:[#allocation14 + $0x90] sm:$0xff]
        %v747 = vld [vmem:[#allocation14 + $0x98] sm:$0xff]
        %v748 = vld [vmem:[#allocation14 + $0xa0] sm:$0xff]
        %v749 = vld [vmem:[#allocation14 + $0xa8] sm:$0xff]
        %v750 = vld [vmem:[#allocation14 + $0xb0] sm:$0xff]
        %v751 = vld [vmem:[#allocation14 + $0xb8] sm:$0xff]
        %v752 = vld [vmem:[#allocation14 + $0xc0] sm:$0xff]
        %v753 = vld [vmem:[#allocation14 + $0xc8] sm:$0xff]
        %v754 = vld [vmem:[#allocation14 + $0xd0] sm:$0xff]
        %v755 = vld [vmem:[#allocation14 + $0xd8] sm:$0xff]
        %v756 = vld [vmem:[#allocation14 + $0xe0] sm:$0xff]
        %v757 = vld [vmem:[#allocation14 + $0xe8] sm:$0xff]
        %v758 = vld [vmem:[#allocation14 + $0xf0] sm:$0xff]
        %v759 = vld [vmem:[#allocation14 + $0xf8] sm:$0xff]
        %v760 = vld [vmem:[#allocation14 + $0x100] sm:$0xff]
        %v761 = vld [vmem:[#allocation14 + $0x108] sm:$0xff]
        %v762 = vld [vmem:[#allocation14 + $0x110] sm:$0xff]
        %v763 = vld [vmem:[#allocation14 + $0x118] sm:$0xff]
        %v764 = vld [vmem:[#allocation14 + $0x120] sm:$0xff]
        %v765 = vld [vmem:[#allocation14 + $0x128] sm:$0xff]
        %v766 = vld [vmem:[#allocation14 + $0x130] sm:$0xff]
        %v767 = vld [vmem:[#allocation14 + $0x138] sm:$0xff]
        %v768 = vld [vmem:[#allocation14 + $0x140] sm:$0xff]
        %v769 = vld [vmem:[#allocation14 + $0x148] sm:$0xff]
        %v770 = vld [vmem:[#allocation14 + $0x150] sm:$0xff]
        %v771 = vld [vmem:[#allocation14 + $0x158] sm:$0xff]
        %v772 = vld [vmem:[#allocation14 + $0x160] sm:$0xff]
        %v773 = vld [vmem:[#allocation14 + $0x168] sm:$0xff]
        %v774 = vld [vmem:[#allocation14 + $0x170] sm:$0xff]
        %v775 = vld [vmem:[#allocation14 + $0x178] sm:$0xff]
        %v776 = vld [vmem:[#allocation14 + $0x180] sm:$0xff]
        %v777 = vld [vmem:[#allocation14 + $0x188] sm:$0xff]
        %v778 = vld [vmem:[#allocation14 + $0x190] sm:$0xff]
        %v779 = vld [vmem:[#allocation14 + $0x198] sm:$0xff]
        %v780 = vld [vmem:[#allocation14 + $0x1a0] sm:$0xff]
        %v781 = vld [vmem:[#allocation14 + $0x1a8] sm:$0xff]
        %v782 = vld [vmem:[#allocation14 + $0x1b0] sm:$0xff]
        %v783 = vld [vmem:[#allocation14 + $0x1b8] sm:$0xff]
        %v784 = vld [vmem:[#allocation14 + $0x1c0] sm:$0xff]
        %v785 = vld [vmem:[#allocation14 + $0x1c8] sm:$0xff]
        %v786 = vld [vmem:[#allocation14 + $0x1d0] sm:$0xff]
        %v787 = vld [vmem:[#allocation14 + $0x1d8] sm:$0xff]
        %v788 = vld [vmem:[#allocation14 + $0x1e0] sm:$0xff]
        %v789 = vld [vmem:[#allocation14 + $0x1e8] sm:$0xff]
        %v790 = vld [vmem:[#allocation14 + $0x1f0] sm:$0xff]
        %v791 = vld [vmem:[#allocation14 + $0x1f8] sm:$0xff]
        %v792 = vld [vmem:[#allocation8] sm:$0xff]
        %v793 = vld [vmem:[#allocation8 + $0x8] sm:$0xff]
        %v794 = vld [vmem:[#allocation8 + $0x10] sm:$0xff]
        %v795 = vld [vmem:[#allocation8 + $0x18] sm:$0xff]
        %v796 = vld [vmem:[#allocation8 + $0x20] sm:$0xff]
        %v797 = vld [vmem:[#allocation8 + $0x28] sm:$0xff]
        %v798 = vld [vmem:[#allocation8 + $0x30] sm:$0xff]
        %v799 = vld [vmem:[#allocation8 + $0x38] sm:$0xff]
        %v800 = vld [vmem:[#allocation8 + $0x40] sm:$0xff]
        %v801 = vld [vmem:[#allocation8 + $0x48] sm:$0xff]
        %v802 = vld [vmem:[#allocation8 + $0x50] sm:$0xff]
        %v803 = vld [vmem:[#allocation8 + $0x58] sm:$0xff]
        %v804 = vld [vmem:[#allocation8 + $0x60] sm:$0xff]
        %v805 = vld [vmem:[#allocation8 + $0x68] sm:$0xff]
        %v806 = vld [vmem:[#allocation8 + $0x70] sm:$0xff]
        %v807 = vld [vmem:[#allocation8 + $0x78] sm:$0xff]
        %v808 = vld [vmem:[#allocation8 + $0x80] sm:$0xff]
        %v809 = vld [vmem:[#allocation8 + $0x88] sm:$0xff]
        %v810 = vld [vmem:[#allocation8 + $0x90] sm:$0xff]
        %v811 = vld [vmem:[#allocation8 + $0x98] sm:$0xff]
        %v812 = vld [vmem:[#allocation8 + $0xa0] sm:$0xff]
        %v813 = vld [vmem:[#allocation8 + $0xa8] sm:$0xff]
        %v814 = vld [vmem:[#allocation8 + $0xb0] sm:$0xff]
        %v815 = vld [vmem:[#allocation8 + $0xb8] sm:$0xff]
        %v816 = vld [vmem:[#allocation8 + $0xc0] sm:$0xff]
        %v817 = vld [vmem:[#allocation8 + $0xc8] sm:$0xff]
        %v818 = vld [vmem:[#allocation8 + $0xd0] sm:$0xff]
        %v819 = vld [vmem:[#allocation8 + $0xd8] sm:$0xff]
        %v820 = vld [vmem:[#allocation8 + $0xe0] sm:$0xff]
        %v821 = vld [vmem:[#allocation8 + $0xe8] sm:$0xff]
        %v822 = vld [vmem:[#allocation8 + $0xf0] sm:$0xff]
        %v823 = vld [vmem:[#allocation8 + $0xf8] sm:$0xff]
        %v824 = vld [vmem:[#allocation8 + $0x100] sm:$0xff]
        %v825 = vld [vmem:[#allocation8 + $0x108] sm:$0xff]
        %v826 = vld [vmem:[#allocation8 + $0x110] sm:$0xff]
        %v827 = vld [vmem:[#allocation8 + $0x118] sm:$0xff]
        %v828 = vld [vmem:[#allocation8 + $0x120] sm:$0xff]
        %v829 = vld [vmem:[#allocation8 + $0x128] sm:$0xff]
        %v830 = vld [vmem:[#allocation8 + $0x130] sm:$0xff]
        %v831 = vld [vmem:[#allocation8 + $0x138] sm:$0xff]
        %v832 = vld [vmem:[#allocation8 + $0x140] sm:$0xff]
        %v833 = vld [vmem:[#allocation8 + $0x148] sm:$0xff]
        %v834 = vld [vmem:[#allocation8 + $0x150] sm:$0xff]
        %v835 = vld [vmem:[#allocation8 + $0x158] sm:$0xff]
        %v836 = vld [vmem:[#allocation8 + $0x160] sm:$0xff]
        %v837 = vld [vmem:[#allocation8 + $0x168] sm:$0xff]
        %v838 = vld [vmem:[#allocation8 + $0x170] sm:$0xff]
        %v839 = vld [vmem:[#allocation8 + $0x178] sm:$0xff]
        %v840 = vld [vmem:[#allocation8 + $0x180] sm:$0xff]
        %v841 = vld [vmem:[#allocation8 + $0x188] sm:$0xff]
        %v842 = vld [vmem:[#allocation8 + $0x190] sm:$0xff]
        %v843 = vld [vmem:[#allocation8 + $0x198] sm:$0xff]
        %v844 = vld [vmem:[#allocation8 + $0x1a0] sm:$0xff]
        %v845 = vld [vmem:[#allocation8 + $0x1a8] sm:$0xff]
        %v846 = vld [vmem:[%s4] sm:$0x3]
        %v847 = vld [vmem:[%s5] sm:$0x3]
        %v848 = vld [vmem:[#allocation10] sm:$0x3]
        %851 = vrot.lane.b32.xlu0 %v726, 124
        %v852 = vpop.permute.xlu0 %851
        %853 = vrot.lane.b32.xlu0 %v727, 124
        %v854 = vpop.permute.xlu0 %853
        %857 = vrot.lane.b32.xlu0 %v726, 4
        %v858 = vpop.permute.xlu0 %857
        %859 = vrot.lane.b32.xlu0 %v727, 4
        %v860 = vpop.permute.xlu0 %859
        %863 = vrot.lane.b32.xlu0 %v726, 12
        %v864 = vpop.permute.xlu0 %863
        %865 = vrot.lane.b32.xlu0 %v727, 12
        %v866 = vpop.permute.xlu0 %865
        %vm869 = vcmask 31744
        %v870 = vsel %vm869, %v852, %v858
        %v871 = vsel %vm869, %v854, %v860
        %vm872 = vcmask 556032
        %v873 = vsel %vm872, %v870, %v864
        %v874 = vsel %vm872, %v871, %v866
        %v876 = vrot.slane %v873, 1
        %vm879 = vcmask 1040384
        %v880 = vrot.slane %v873, 7
        %v881 = vrot.slane %v874, 7
        %v882 = vsel %vm879, %v880, %v881
        %v886 = vrot.slane %v874, 5
        %v888 = vsel %vm879, %v876, %v880
        %v889 = vsel %vm879, %v881, %v886
        %vm892 = vcmask 1046528
        %v893 = vrot.slane %v888, 1
        %v894 = vrot.slane %v882, 1
        %v895 = vsel %vm892, %v893, %v894
        %v896 = vrot.slane %v889, 1
        %v897 = vsel %vm892, %v894, %v896
        %898 = vrot.lane.b32.xlu0 %v895, 72
        %v899 = vpop.permute.xlu0 %898
        %900 = vrot.lane.b32.xlu0 %v897, 72
        %v901 = vpop.permute.xlu0 %900
        %vm904 = vcmask 1045504
        %v905 = vrot.slane %v888, 2
        %v906 = vrot.slane %v882, 2
        %v907 = vsel %vm904, %v905, %v906
        %v908 = vrot.slane %v889, 2
        %v909 = vsel %vm904, %v906, %v908
        %910 = vrot.lane.b32.xlu0 %v907, 16
        %v911 = vpop.permute.xlu0 %910
        %912 = vrot.lane.b32.xlu0 %v909, 16
        %v913 = vpop.permute.xlu0 %912
        %vm916 = vcmask 588800
        %v917 = vsel %vm916, %v888, %v899
        %v918 = vsel %vm916, %v882, %v901
        %vm919 = vcmask 130048
        %v920 = vsel %vm919, %v899, %v911
        %v921 = vsel %vm919, %v901, %v913
        %v923 = vperm.slane %v846, 0
        %v924 = vperm.slane %v846, 1
        %vm927 = vcmask 719872
        %v929 = vsel %vm927, %v920, 0
        %v932 = vsel %vm927, %v921, 0
        %934 = vmatpush.msra.mxu0 %v822
        %935 = vmatpush.msra.mxu0 %v820
        %936 = vmatpush.msra.mxu0 %v818
        %937 = vmatpush.msra.mxu0 %v816
        %938 = vmatpush.msra.mxu0 %v814
        %939 = vmatpush.msra.mxu0 %v812
        %940 = vmatpush.msra.mxu0 %v810
        %941 = vmatpush.msra.mxu0 %v808
        %942 = vmatpush.msra.mxu0 %v806
        %943 = vmatpush.msra.mxu0 %v804
        %944 = vmatpush.msra.mxu0 %v802
        %945 = vmatpush.msra.mxu0 %v800
        %946 = vmatpush.msra.mxu0 %v798
        %947 = vmatpush.msra.mxu0 %v796
        %948 = vmatpush.msra.mxu0 %v794
        %949 = vmatpush.msra.mxu0 %v792
        %950 = vmatmul.f32.gmra.mxu0 %v917
        %v951 = vpop.f32.mrf.mxu0
        %v952 = vadd.f32 %v923, %v951
        %953 = vmatmul.f32.gmra.mxu0 %v918
        %v954 = vpop.f32.mrf.mxu0
        %v955 = vadd.f32 %v923, %v954
        %956 = vdwg.mxu0
        %957 = vmatpush.msra.mxu0 0.0
        %958 = vmatpush.msra.mxu0 0.0
        %959 = vmatpush.msra.mxu0 0.0
        %960 = vmatpush.msra.mxu0 0.0
        %961 = vmatpush.msra.mxu0 0.0
        %962 = vmatpush.msra.mxu0 %v844
        %963 = vmatpush.msra.mxu0 %v842
        %964 = vmatpush.msra.mxu0 %v840
        %965 = vmatpush.msra.mxu0 %v838
        %966 = vmatpush.msra.mxu0 %v836
        %967 = vmatpush.msra.mxu0 %v834
        %968 = vmatpush.msra.mxu0 %v832
        %969 = vmatpush.msra.mxu0 %v830
        %970 = vmatpush.msra.mxu0 %v828
        %971 = vmatpush.msra.mxu0 %v826
        %972 = vmatpush.msra.mxu0 %v824
        %973 = vmatmul.f32.gmra.mxu0 %v929
        %v974 = vpop.f32.mrf.mxu0
        %v975 = vadd.f32 %v952, %v974
        %976 = vmatmul.f32.gmra.mxu0 %v932
        %v977 = vpop.f32.mrf.mxu0
        %v978 = vadd.f32 %v955, %v977
        %979 = vdwg.mxu0
        %980 = vmatpush.msra.mxu0 %v823
        %981 = vmatpush.msra.mxu0 %v821
        %982 = vmatpush.msra.mxu0 %v819
        %983 = vmatpush.msra.mxu0 %v817
        %984 = vmatpush.msra.mxu0 %v815
        %985 = vmatpush.msra.mxu0 %v813
        %986 = vmatpush.msra.mxu0 %v811
        %987 = vmatpush.msra.mxu0 %v809
        %988 = vmatpush.msra.mxu0 %v807
        %989 = vmatpush.msra.mxu0 %v805
        %990 = vmatpush.msra.mxu0 %v803
        %991 = vmatpush.msra.mxu0 %v801
        %992 = vmatpush.msra.mxu0 %v799
        %993 = vmatpush.msra.mxu0 %v797
        %994 = vmatpush.msra.mxu0 %v795
        %995 = vmatpush.msra.mxu0 %v793
        %996 = vmatmul.f32.gmra.mxu0 %v917
        %v997 = vpop.f32.mrf.mxu0
        %v998 = vadd.f32 %v924, %v997
        %999 = vmatmul.f32.gmra.mxu0 %v918
        %v1000 = vpop.f32.mrf.mxu0
        %v1001 = vadd.f32 %v924, %v1000
        %1002 = vdwg.mxu0
        %1003 = vmatpush.msra.mxu0 0.0
        %1004 = vmatpush.msra.mxu0 0.0
        %1005 = vmatpush.msra.mxu0 0.0
        %1006 = vmatpush.msra.mxu0 0.0
        %1007 = vmatpush.msra.mxu0 0.0
        %1008 = vmatpush.msra.mxu0 %v845
        %1009 = vmatpush.msra.mxu0 %v843
        %1010 = vmatpush.msra.mxu0 %v841
        %1011 = vmatpush.msra.mxu0 %v839
        %1012 = vmatpush.msra.mxu0 %v837
        %1013 = vmatpush.msra.mxu0 %v835
        %1014 = vmatpush.msra.mxu0 %v833
        %1015 = vmatpush.msra.mxu0 %v831
        %1016 = vmatpush.msra.mxu0 %v829
        %1017 = vmatpush.msra.mxu0 %v827
        %1018 = vmatpush.msra.mxu0 %v825
        %1019 = vmatmul.f32.gmra.mxu0 %v929
        %v1020 = vpop.f32.mrf.mxu0
        %v1021 = vadd.f32 %v998, %v1020
        %1022 = vmatmul.f32.gmra.mxu0 %v932
        %v1023 = vpop.f32.mrf.mxu0
        %v1024 = vadd.f32 %v1001, %v1023
        %1025 = vdwg.mxu0
        %v1026 = vadd.f32 %v975, %v978
        %v1027 = vrot.slane %v1026, 4
        %v1028 = vadd.f32 %v1026, %v1027
        %v1029 = vrot.slane %v1028, 2
        %v1030 = vadd.f32 %v1028, %v1029
        %v1031 = vrot.slane %v1030, 1
        %v1032 = vadd.f32 %v1030, %v1031
        %v1033 = vadd.f32 %v1021, %v1024
        %v1034 = vrot.slane %v1033, 4
        %v1035 = vadd.f32 %v1033, %v1034
        %v1036 = vrot.slane %v1035, 2
        %v1037 = vadd.f32 %v1035, %v1036
        %v1038 = vrot.slane %v1037, 1
        %v1039 = vadd.f32 %v1037, %v1038
        %1040 = vmatpush.msra.mxu0 %v758
        %1041 = vmatpush.msra.mxu0 %v756
        %1042 = vmatpush.msra.mxu0 %v754
        %1043 = vmatpush.msra.mxu0 %v752
        %1044 = vmatpush.msra.mxu0 %v750
        %1045 = vmatpush.msra.mxu0 %v748
        %1046 = vmatpush.msra.mxu0 %v746
        %1047 = vmatpush.msra.mxu0 %v744
        %1048 = vmatpush.msra.mxu0 %v742
        %1049 = vmatpush.msra.mxu0 %v740
        %1050 = vmatpush.msra.mxu0 %v738
        %1051 = vmatpush.msra.mxu0 %v736
        %1052 = vmatpush.msra.mxu0 %v734
        %1053 = vmatpush.msra.mxu0 %v732
        %1054 = vmatpush.msra.mxu0 %v730
        %1055 = vmatpush.msra.mxu0 %v728
        %1056 = vmatmul.f32.gmra.mxu0 %v1032
        %v1057 = vpop.f32.mrf.mxu0
        %v1058 = vadd.f32 0.0, %v1057
        %1059 = vdwg.mxu0
        %1060 = vmatpush.msra.mxu0 %v790
        %1061 = vmatpush.msra.mxu0 %v788
        %1062 = vmatpush.msra.mxu0 %v786
        %1063 = vmatpush.msra.mxu0 %v784
        %1064 = vmatpush.msra.mxu0 %v782
        %1065 = vmatpush.msra.mxu0 %v780
        %1066 = vmatpush.msra.mxu0 %v778
        %1067 = vmatpush.msra.mxu0 %v776
        %1068 = vmatpush.msra.mxu0 %v774
        %1069 = vmatpush.msra.mxu0 %v772
        %1070 = vmatpush.msra.mxu0 %v770
        %1071 = vmatpush.msra.mxu0 %v768
        %1072 = vmatpush.msra.mxu0 %v766
        %1073 = vmatpush.msra.mxu0 %v764
        %1074 = vmatpush.msra.mxu0 %v762
        %1075 = vmatpush.msra.mxu0 %v760
        %1076 = vmatmul.f32.gmra.mxu0 %v1039
        %v1077 = vpop.f32.mrf.mxu0
        %v1078 = vadd.f32 %v1058, %v1077
        %1079 = vdwg.mxu0
        %1080 = vmatpush.msra.mxu0 %v759
        %1081 = vmatpush.msra.mxu0 %v757
        %1082 = vmatpush.msra.mxu0 %v755
        %1083 = vmatpush.msra.mxu0 %v753
        %1084 = vmatpush.msra.mxu0 %v751
        %1085 = vmatpush.msra.mxu0 %v749
        %1086 = vmatpush.msra.mxu0 %v747
        %1087 = vmatpush.msra.mxu0 %v745
        %1088 = vmatpush.msra.mxu0 %v743
        %1089 = vmatpush.msra.mxu0 %v741
        %1090 = vmatpush.msra.mxu0 %v739
        %1091 = vmatpush.msra.mxu0 %v737
        %1092 = vmatpush.msra.mxu0 %v735
        %1093 = vmatpush.msra.mxu0 %v733
        %1094 = vmatpush.msra.mxu0 %v731
        %1095 = vmatpush.msra.mxu0 %v729
        %1096 = vmatmul.f32.gmra.mxu0 %v1032
        %v1097 = vpop.f32.mrf.mxu0
        %v1098 = vadd.f32 0.0, %v1097
        %1099 = vdwg.mxu0
        %1100 = vmatpush.msra.mxu0 %v791
        %1101 = vmatpush.msra.mxu0 %v789
        %1102 = vmatpush.msra.mxu0 %v787
        %1103 = vmatpush.msra.mxu0 %v785
        %1104 = vmatpush.msra.mxu0 %v783
        %1105 = vmatpush.msra.mxu0 %v781
        %1106 = vmatpush.msra.mxu0 %v779
        %1107 = vmatpush.msra.mxu0 %v777
        %1108 = vmatpush.msra.mxu0 %v775
        %1109 = vmatpush.msra.mxu0 %v773
        %1110 = vmatpush.msra.mxu0 %v771
        %1111 = vmatpush.msra.mxu0 %v769
        %1112 = vmatpush.msra.mxu0 %v767
        %1113 = vmatpush.msra.mxu0 %v765
        %1114 = vmatpush.msra.mxu0 %v763
        %1115 = vmatpush.msra.mxu0 %v761
        %1116 = vmatmul.f32.gmra.mxu0 %v1039
        %v1117 = vpop.f32.mrf.mxu0
        %v1118 = vadd.f32 %v1098, %v1117
        %1119 = vdwg.mxu0
        %v1120 = vperm.slane %v1078, 0
        %v1121 = vperm.slane %v1118, 0
        %v1122 = vsub.f32 %v975, %v1120
        %v1123 = vsub.f32 %v1021, %v1121
        %v1124 = vsub.f32 %v978, %v1120
        %v1125 = vsub.f32 %v1024, %v1121
        %v1126 = vmul.f32 %v1122, %v1122
        %v1127 = vmul.f32 %v1123, %v1123
        %v1128 = vmul.f32 %v1124, %v1124
        %v1129 = vmul.f32 %v1125, %v1125
        %v1130 = vadd.f32 %v1126, %v1128
        %v1131 = vrot.slane %v1130, 4
        %v1132 = vadd.f32 %v1130, %v1131
        %v1133 = vrot.slane %v1132, 2
        %v1134 = vadd.f32 %v1132, %v1133
        %v1135 = vrot.slane %v1134, 1
        %v1136 = vadd.f32 %v1134, %v1135
        %v1137 = vadd.f32 %v1127, %v1129
        %v1138 = vrot.slane %v1137, 4
        %v1139 = vadd.f32 %v1137, %v1138
        %v1140 = vrot.slane %v1139, 2
        %v1141 = vadd.f32 %v1139, %v1140
        %v1142 = vrot.slane %v1141, 1
        %v1143 = vadd.f32 %v1141, %v1142
        %1144 = vmatpush.msra.mxu0 %v758
        %1145 = vmatpush.msra.mxu0 %v756
        %1146 = vmatpush.msra.mxu0 %v754
        %1147 = vmatpush.msra.mxu0 %v752
        %1148 = vmatpush.msra.mxu0 %v750
        %1149 = vmatpush.msra.mxu0 %v748
        %1150 = vmatpush.msra.mxu0 %v746
        %1151 = vmatpush.msra.mxu0 %v744
        %1152 = vmatpush.msra.mxu0 %v742
        %1153 = vmatpush.msra.mxu0 %v740
        %1154 = vmatpush.msra.mxu0 %v738
        %1155 = vmatpush.msra.mxu0 %v736
        %1156 = vmatpush.msra.mxu0 %v734
        %1157 = vmatpush.msra.mxu0 %v732
        %1158 = vmatpush.msra.mxu0 %v730
        %1159 = vmatpush.msra.mxu0 %v728
        %1160 = vmatmul.f32.gmra.mxu0 %v1136
        %v1161 = vpop.f32.mrf.mxu0
        %v1162 = vadd.f32 1e-05, %v1161
        %1163 = vdwg.mxu0
        %1164 = vmatpush.msra.mxu0 %v790
        %1165 = vmatpush.msra.mxu0 %v788
        %1166 = vmatpush.msra.mxu0 %v786
        %1167 = vmatpush.msra.mxu0 %v784
        %1168 = vmatpush.msra.mxu0 %v782
        %1169 = vmatpush.msra.mxu0 %v780
        %1170 = vmatpush.msra.mxu0 %v778
        %1171 = vmatpush.msra.mxu0 %v776
        %1172 = vmatpush.msra.mxu0 %v774
        %1173 = vmatpush.msra.mxu0 %v772
        %1174 = vmatpush.msra.mxu0 %v770
        %1175 = vmatpush.msra.mxu0 %v768
        %1176 = vmatpush.msra.mxu0 %v766
        %1177 = vmatpush.msra.mxu0 %v764
        %1178 = vmatpush.msra.mxu0 %v762
        %1179 = vmatpush.msra.mxu0 %v760
        %1180 = vmatmul.f32.gmra.mxu0 %v1143
        %v1181 = vpop.f32.mrf.mxu0
        %v1182 = vadd.f32 %v1162, %v1181
        %1183 = vdwg.mxu0
        %1184 = vmatpush.msra.mxu0 %v759
        %1185 = vmatpush.msra.mxu0 %v757
        %1186 = vmatpush.msra.mxu0 %v755
        %1187 = vmatpush.msra.mxu0 %v753
        %1188 = vmatpush.msra.mxu0 %v751
        %1189 = vmatpush.msra.mxu0 %v749
        %1190 = vmatpush.msra.mxu0 %v747
        %1191 = vmatpush.msra.mxu0 %v745
        %1192 = vmatpush.msra.mxu0 %v743
        %1193 = vmatpush.msra.mxu0 %v741
        %1194 = vmatpush.msra.mxu0 %v739
        %1195 = vmatpush.msra.mxu0 %v737
        %1196 = vmatpush.msra.mxu0 %v735
        %1197 = vmatpush.msra.mxu0 %v733
        %1198 = vmatpush.msra.mxu0 %v731
        %1199 = vmatpush.msra.mxu0 %v729
        %1200 = vmatmul.f32.gmra.mxu0 %v1136
        %v1201 = vpop.f32.mrf.mxu0
        %v1202 = vadd.f32 1e-05, %v1201
        %1203 = vdwg.mxu0
        %1204 = vmatpush.msra.mxu0 %v791
        %1205 = vmatpush.msra.mxu0 %v789
        %1206 = vmatpush.msra.mxu0 %v787
        %1207 = vmatpush.msra.mxu0 %v785
        %1208 = vmatpush.msra.mxu0 %v783
        %1209 = vmatpush.msra.mxu0 %v781
        %1210 = vmatpush.msra.mxu0 %v779
        %1211 = vmatpush.msra.mxu0 %v777
        %1212 = vmatpush.msra.mxu0 %v775
        %1213 = vmatpush.msra.mxu0 %v773
        %1214 = vmatpush.msra.mxu0 %v771
        %1215 = vmatpush.msra.mxu0 %v769
        %1216 = vmatpush.msra.mxu0 %v767
        %1217 = vmatpush.msra.mxu0 %v765
        %1218 = vmatpush.msra.mxu0 %v763
        %1219 = vmatpush.msra.mxu0 %v761
        %1220 = vmatmul.f32.gmra.mxu0 %v1143
        %v1221 = vpop.f32.mrf.mxu0
        %v1222 = vadd.f32 %v1202, %v1221
        %1223 = vdwg.mxu0
        %v1224 = vrsqrt.pop %v1182
        %v1225 = vmul.f32 %v1224, %v1182
        %v1226 = vmul.f32 %v1225, %v1224
        %v1227 = vmul.f32 0.5, %v1226
        %v1228 = vsub.f32 1.5, %v1227
        %v1229 = vmul.f32 %v1224, %v1228
        %vm1230 = vweird.f32 %v1182
        %vm1231 = vweird.f32 %v1224
        %vm1232 = vmor %vm1230, %vm1231
        %v1233 = vsel %vm1232, %v1224, %v1229
        %v1234 = vrsqrt.pop %v1222
        %v1235 = vmul.f32 %v1234, %v1222
        %v1236 = vmul.f32 %v1235, %v1234
        %v1237 = vmul.f32 0.5, %v1236
        %v1238 = vsub.f32 1.5, %v1237
        %v1239 = vmul.f32 %v1234, %v1238
        %vm1240 = vweird.f32 %v1222
        %vm1241 = vweird.f32 %v1234
        %vm1242 = vmor %vm1240, %vm1241
        %v1243 = vsel %vm1242, %v1234, %v1239
        %v1244 = vperm.slane %v1233, 0
        %v1245 = vperm.slane %v1243, 0
        %v1246 = vmul.f32 %v1122, %v1244
        %v1247 = vmul.f32 %v1123, %v1245
        %v1248 = vmul.f32 %v1124, %v1244
        %v1249 = vmul.f32 %v1125, %v1245
        %v1251 = vperm.slane %v847, 0
        %v1252 = vperm.slane %v847, 1
        %v1255 = vmul.f32 %v1246, %v1251
        %v1256 = vmul.f32 %v1247, %v1252
        %v1257 = vmul.f32 %v1248, %v1251
        %v1258 = vmul.f32 %v1249, %v1252
        %v1260 = vperm.slane %v848, 0
        %v1261 = vperm.slane %v848, 1
        %v1264 = vadd.f32 %v1255, %v1260
        %v1265 = vadd.f32 %v1256, %v1261
        %v1266 = vadd.f32 %v1257, %v1260
        %v1267 = vadd.f32 %v1258, %v1261
        %v1268 = vmin.f32 %v1264, 20.0
        %v1269 = vmin.f32 %v1265, 20.0
        %v1270 = vmin.f32 %v1266, 20.0
        %v1271 = vmin.f32 %v1267, 20.0
        %v1272 = vmul.f32 %v1268, 1.442695
        %v1273 = vpow.pop %v1272
        %v1274 = vmul.f32 %v1269, 1.442695
        %v1275 = vpow.pop %v1274
        %v1276 = vmul.f32 %v1270, 1.442695
        %v1277 = vpow.pop %v1276
        %v1278 = vmul.f32 %v1271, 1.442695
        %v1279 = vpow.pop %v1278
        %v1280 = vadd.f32 %v1273, 2.0
        %v1281 = vadd.f32 %v1275, 2.0
        %v1282 = vadd.f32 %v1277, 2.0
        %v1283 = vadd.f32 %v1279, 2.0
        %v1284 = vmul.f32 %v1273, %v1280
        %v1285 = vmul.f32 %v1275, %v1281
        %v1286 = vmul.f32 %v1277, %v1282
        %v1287 = vmul.f32 %v1279, %v1283
        %v1288 = vadd.f32 %v1284, 2.0
        %v1289 = vadd.f32 %v1285, 2.0
        %v1290 = vadd.f32 %v1286, 2.0
        %v1291 = vadd.f32 %v1287, 2.0
        %v1292 = vrcp.pop %v1288
        %v1293 = vmul.f32 %v1288, %v1292
        %v1294 = vsub.f32 1.0, %v1293
        %v1295 = vmul.f32 %v1292, %v1294
        %v1296 = vadd.f32 %v1292, %v1295
        %vm1297 = vweird.f32 %v1288
        %vm1298 = vweird.f32 %v1292
        %vm1299 = vmor %vm1297, %vm1298
        %v1300 = vsel %vm1299, %v1292, %v1296
        %v1301 = vand.u32 2147483647, %v1288
        %vm1302 = vcmp.eq.f32.partialorder %v1301, 8.507059e+37
        %v1303 = vand.u32 %v1288, 2147483648
        %v1304 = vor.u32 1.1754944e-38, %v1303
        %v1305 = vsel %vm1302, %v1304, %v1300
        %v1306 = vmul.f32 %v1284, %v1305
        %v1307 = vrcp.pop %v1289
        %v1308 = vmul.f32 %v1289, %v1307
        %v1309 = vsub.f32 1.0, %v1308
        %v1310 = vmul.f32 %v1307, %v1309
        %v1311 = vadd.f32 %v1307, %v1310
        %vm1312 = vweird.f32 %v1289
        %vm1313 = vweird.f32 %v1307
        %vm1314 = vmor %vm1312, %vm1313
        %v1315 = vsel %vm1314, %v1307, %v1311
        %v1316 = vand.u32 2147483647, %v1289
        %vm1317 = vcmp.eq.f32.partialorder %v1316, 8.507059e+37
        %v1318 = vand.u32 %v1289, 2147483648
        %v1319 = vor.u32 1.1754944e-38, %v1318
        %v1320 = vsel %vm1317, %v1319, %v1315
        %v1321 = vmul.f32 %v1285, %v1320
        %v1322 = vrcp.pop %v1290
        %v1323 = vmul.f32 %v1290, %v1322
        %v1324 = vsub.f32 1.0, %v1323
        %v1325 = vmul.f32 %v1322, %v1324
        %v1326 = vadd.f32 %v1322, %v1325
        %vm1327 = vweird.f32 %v1290
        %vm1328 = vweird.f32 %v1322
        %vm1329 = vmor %vm1327, %vm1328
        %v1330 = vsel %vm1329, %v1322, %v1326
        %v1331 = vand.u32 2147483647, %v1290
        %vm1332 = vcmp.eq.f32.partialorder %v1331, 8.507059e+37
        %v1333 = vand.u32 %v1290, 2147483648
        %v1334 = vor.u32 1.1754944e-38, %v1333
        %v1335 = vsel %vm1332, %v1334, %v1330
        %v1336 = vmul.f32 %v1286, %v1335
        %v1337 = vrcp.pop %v1291
        %v1338 = vmul.f32 %v1291, %v1337
        %v1339 = vsub.f32 1.0, %v1338
        %v1340 = vmul.f32 %v1337, %v1339
        %v1341 = vadd.f32 %v1337, %v1340
        %vm1342 = vweird.f32 %v1291
        %vm1343 = vweird.f32 %v1337
        %vm1344 = vmor %vm1342, %vm1343
        %v1345 = vsel %vm1344, %v1337, %v1341
        %v1346 = vand.u32 2147483647, %v1291
        %vm1347 = vcmp.eq.f32.partialorder %v1346, 8.507059e+37
        %v1348 = vand.u32 %v1291, 2147483648
        %v1349 = vor.u32 1.1754944e-38, %v1348
        %v1350 = vsel %vm1347, %v1349, %v1345
        %v1351 = vmul.f32 %v1287, %v1350
        %v1352 = vmul.f32 %v1264, %v1306
        %v1353 = vmul.f32 %v1265, %v1321
        %v1354 = vmul.f32 %v1266, %v1336
        %v1355 = vmul.f32 %v1267, %v1351
        %v1356 = vld [vmem:[%s622] sm:$0x1]
        %v1357 = vmin.f32 %v1356, 20.0
        %v1358 = vmul.f32 %v1357, 1.442695
        %v1359 = vpow.pop %v1358
        %v1360 = vadd.f32 %v1359, 2.0
        %v1361 = vmul.f32 %v1359, %v1360
        %v1362 = vadd.f32 %v1361, 2.0
        %v1363 = vrcp.pop %v1362
        %v1364 = vmul.f32 %v1362, %v1363
        %v1365 = vsub.f32 1.0, %v1364
        %v1366 = vmul.f32 %v1363, %v1365
        %v1367 = vadd.f32 %v1363, %v1366
        %vm1368 = vweird.f32 %v1362
        %vm1369 = vweird.f32 %v1363
        %vm1370 = vmor %vm1368, %vm1369
        %v1371 = vsel %vm1370, %v1363, %v1367
        %v1372 = vand.u32 2147483647, %v1362
        %vm1373 = vcmp.eq.f32.partialorder %v1372, 8.507059e+37
        %v1374 = vand.u32 %v1362, 2147483648
        %v1375 = vor.u32 1.1754944e-38, %v1374
        %v1376 = vsel %vm1373, %v1375, %v1371
        %v1377 = vmul.f32 %v1361, %v1376
        %v1378 = vmul.f32 %v1356, %v1377
        %v1379 = vld [vmem:[#allocation16] sm:$0xff]
        %v1380 = vld [vmem:[#allocation16 + $0x8] sm:$0xff]
        %v1381 = vld [vmem:[%s13] sm:$0x3]
        %v1383 = vperm.slane %v1381, 0
        %v1384 = vperm.slane %v1381, 1
        %vm1387 = vcmask 64512
        %v1389 = vsel %vm1387, %v1378, 0
        %1391 = vmatpush.msra.mxu0 0.0
        %1392 = vmatpush.msra.mxu0 0.0
        %1393 = vmatpush.msra.mxu0 0.0
        %1394 = vmatpush.msra.mxu0 0.0
        %1395 = vmatpush.msra.mxu0 0.0
        %1396 = vmatpush.msra.mxu0 0.0
        %1397 = vmatpush.msra.mxu0 0.0
        %1398 = vmatpush.msra.mxu0 0.0
        %1399 = vmatpush.msra.mxu0 0.0
        %1400 = vmatpush.msra.mxu0 0.0
        %1401 = vmatpush.msra.mxu0 0.0
        %1402 = vmatpush.msra.mxu0 0.0
        %1403 = vmatpush.msra.mxu0 0.0
        %1404 = vmatpush.msra.mxu0 0.0
        %1405 = vmatpush.msra.mxu0 0.0
        %1406 = vmatpush.msra.mxu0 %v1379
        %1407 = vmatmul.f32.gmra.mxu0 %v1389
        %v1408 = vpop.f32.mrf.mxu0
        %v1409 = vadd.f32 %v1383, %v1408
        %1410 = vdwg.mxu0
        %1411 = vmatpush.msra.mxu0 0.0
        %1412 = vmatpush.msra.mxu0 0.0
        %1413 = vmatpush.msra.mxu0 0.0
        %1414 = vmatpush.msra.mxu0 0.0
        %1415 = vmatpush.msra.mxu0 0.0
        %1416 = vmatpush.msra.mxu0 0.0
        %1417 = vmatpush.msra.mxu0 0.0
        %1418 = vmatpush.msra.mxu0 0.0
        %1419 = vmatpush.msra.mxu0 0.0
        %1420 = vmatpush.msra.mxu0 0.0
        %1421 = vmatpush.msra.mxu0 0.0
        %1422 = vmatpush.msra.mxu0 0.0
        %1423 = vmatpush.msra.mxu0 0.0
        %1424 = vmatpush.msra.mxu0 0.0
        %1425 = vmatpush.msra.mxu0 0.0
        %1426 = vmatpush.msra.mxu0 %v1380
        %1427 = vmatmul.f32.gmra.mxu0 %v1389
        %v1428 = vpop.f32.mrf.mxu0
        %v1429 = vadd.f32 %v1384, %v1428
        %1430 = vdwg.mxu0
        %v1431 = vperm.slane %v1409, 0
        %v1432 = vperm.slane %v1429, 0
        %v1433 = vadd.f32 %v1352, %v1431
        %v1434 = vadd.f32 %v1353, %v1432
        %v1435 = vadd.f32 %v1354, %v1431
        %v1436 = vadd.f32 %v1355, %v1432
        %v1437 = vld [vmem:[%s632] sm:$0xff]
        %v1438 = vld [vmem:[%s632 + $0x8] sm:$0xff]
        %v1439 = vld [vmem:[%s632 + $0x10] sm:$0xff]
        %v1440 = vld [vmem:[%s632 + $0x18] sm:$0xff]
        %v1441 = vadd.f32 %v1433, %v1437
        %v1442 = vadd.f32 %v1434, %v1438
        %v1443 = vadd.f32 %v1435, %v1439
        %v1444 = vadd.f32 %v1436, %v1440
        %v1445 = vld [vmem:[#allocation11] sm:$0xff]
        %v1446 = vld [vmem:[#allocation11 + $0x8] sm:$0xff]
        %v1447 = vld [vmem:[#allocation11 + $0x10] sm:$0xff]
        %v1448 = vld [vmem:[#allocation11 + $0x18] sm:$0xff]
        %v1449 = vld [vmem:[#allocation11 + $0x20] sm:$0xff]
        %v1450 = vld [vmem:[#allocation11 + $0x28] sm:$0xff]
        %v1451 = vld [vmem:[#allocation11 + $0x30] sm:$0xff]
        %v1452 = vld [vmem:[#allocation11 + $0x38] sm:$0xff]
        %v1453 = vld [vmem:[#allocation11 + $0x40] sm:$0xff]
        %v1454 = vld [vmem:[#allocation11 + $0x48] sm:$0xff]
        %v1455 = vld [vmem:[#allocation11 + $0x50] sm:$0xff]
        %v1456 = vld [vmem:[#allocation11 + $0x58] sm:$0xff]
        %v1457 = vld [vmem:[#allocation11 + $0x60] sm:$0xff]
        %v1458 = vld [vmem:[#allocation11 + $0x68] sm:$0xff]
        %v1459 = vld [vmem:[#allocation11 + $0x70] sm:$0xff]
        %v1460 = vld [vmem:[#allocation11 + $0x78] sm:$0xff]
        %v1461 = vld [vmem:[#allocation11 + $0x80] sm:$0xff]
        %v1462 = vld [vmem:[#allocation11 + $0x88] sm:$0xff]
        %v1463 = vld [vmem:[#allocation11 + $0x90] sm:$0xff]
        %v1464 = vld [vmem:[#allocation11 + $0x98] sm:$0xff]
        %v1465 = vld [vmem:[#allocation11 + $0xa0] sm:$0xff]
        %v1466 = vld [vmem:[#allocation11 + $0xa8] sm:$0xff]
        %v1467 = vld [vmem:[#allocation11 + $0xb0] sm:$0xff]
        %v1468 = vld [vmem:[#allocation11 + $0xb8] sm:$0xff]
        %v1469 = vld [vmem:[#allocation11 + $0xc0] sm:$0xff]
        %v1470 = vld [vmem:[#allocation11 + $0xc8] sm:$0xff]
        %v1471 = vld [vmem:[#allocation11 + $0xd0] sm:$0xff]
        %v1472 = vld [vmem:[#allocation11 + $0xd8] sm:$0xff]
        %v1473 = vld [vmem:[#allocation11 + $0xe0] sm:$0xff]
        %v1474 = vld [vmem:[#allocation11 + $0xe8] sm:$0xff]
        %v1475 = vld [vmem:[#allocation11 + $0xf0] sm:$0xff]
        %v1476 = vld [vmem:[#allocation11 + $0xf8] sm:$0xff]
        %v1477 = vld [vmem:[#allocation11 + $0x100] sm:$0xff]
        %v1478 = vld [vmem:[#allocation11 + $0x108] sm:$0xff]
        %v1479 = vld [vmem:[#allocation11 + $0x110] sm:$0xff]
        %v1480 = vld [vmem:[#allocation11 + $0x118] sm:$0xff]
        %v1481 = vld [vmem:[#allocation11 + $0x120] sm:$0xff]
        %v1482 = vld [vmem:[#allocation11 + $0x128] sm:$0xff]
        %v1483 = vld [vmem:[#allocation11 + $0x130] sm:$0xff]
        %v1484 = vld [vmem:[#allocation11 + $0x138] sm:$0xff]
        %v1485 = vld [vmem:[#allocation11 + $0x140] sm:$0xff]
        %v1486 = vld [vmem:[#allocation11 + $0x148] sm:$0xff]
        %v1487 = vld [vmem:[#allocation11 + $0x150] sm:$0xff]
        %v1488 = vld [vmem:[#allocation11 + $0x158] sm:$0xff]
        %v1489 = vld [vmem:[#allocation11 + $0x160] sm:$0xff]
        %v1490 = vld [vmem:[#allocation11 + $0x168] sm:$0xff]
        %v1491 = vld [vmem:[#allocation11 + $0x170] sm:$0xff]
        %v1492 = vld [vmem:[#allocation11 + $0x178] sm:$0xff]
        %v1493 = vld [vmem:[#allocation11 + $0x180] sm:$0xff]
        %v1494 = vld [vmem:[#allocation11 + $0x188] sm:$0xff]
        %v1495 = vld [vmem:[#allocation11 + $0x190] sm:$0xff]
        %v1496 = vld [vmem:[#allocation11 + $0x198] sm:$0xff]
        %v1497 = vld [vmem:[#allocation11 + $0x1a0] sm:$0xff]
        %v1498 = vld [vmem:[#allocation11 + $0x1a8] sm:$0xff]
        %v1499 = vld [vmem:[#allocation11 + $0x1b0] sm:$0xff]
        %v1500 = vld [vmem:[#allocation11 + $0x1b8] sm:$0xff]
        %v1501 = vld [vmem:[#allocation11 + $0x1c0] sm:$0xff]
        %v1502 = vld [vmem:[#allocation11 + $0x1c8] sm:$0xff]
        %v1503 = vld [vmem:[#allocation11 + $0x1d0] sm:$0xff]
        %v1504 = vld [vmem:[#allocation11 + $0x1d8] sm:$0xff]
        %v1505 = vld [vmem:[#allocation11 + $0x1e0] sm:$0xff]
        %v1506 = vld [vmem:[#allocation11 + $0x1e8] sm:$0xff]
        %v1507 = vld [vmem:[#allocation11 + $0x1f0] sm:$0xff]
        %v1508 = vld [vmem:[#allocation11 + $0x1f8] sm:$0xff]
        %v1509 = vld [vmem:[#allocation11 + $0x200] sm:$0xff]
        %v1510 = vld [vmem:[#allocation11 + $0x208] sm:$0xff]
        %v1511 = vld [vmem:[#allocation11 + $0x210] sm:$0xff]
        %v1512 = vld [vmem:[#allocation11 + $0x218] sm:$0xff]
        %v1513 = vld [vmem:[#allocation11 + $0x220] sm:$0xff]
        %v1514 = vld [vmem:[#allocation11 + $0x228] sm:$0xff]
        %v1515 = vld [vmem:[#allocation11 + $0x230] sm:$0xff]
        %v1516 = vld [vmem:[#allocation11 + $0x238] sm:$0xff]
        %v1517 = vld [vmem:[#allocation11 + $0x240] sm:$0xff]
        %v1518 = vld [vmem:[#allocation11 + $0x248] sm:$0xff]
        %v1519 = vld [vmem:[#allocation11 + $0x250] sm:$0xff]
        %v1520 = vld [vmem:[#allocation11 + $0x258] sm:$0xff]
        %v1521 = vld [vmem:[#allocation11 + $0x260] sm:$0xff]
        %v1522 = vld [vmem:[#allocation11 + $0x268] sm:$0xff]
        %v1523 = vld [vmem:[#allocation11 + $0x270] sm:$0xff]
        %v1524 = vld [vmem:[#allocation11 + $0x278] sm:$0xff]
        %v1525 = vld [vmem:[#allocation11 + $0x280] sm:$0xff]
        %v1526 = vld [vmem:[#allocation11 + $0x288] sm:$0xff]
        %v1527 = vld [vmem:[#allocation11 + $0x290] sm:$0xff]
        %v1528 = vld [vmem:[#allocation11 + $0x298] sm:$0xff]
        %v1529 = vld [vmem:[#allocation11 + $0x2a0] sm:$0xff]
        %v1530 = vld [vmem:[#allocation11 + $0x2a8] sm:$0xff]
        %v1531 = vld [vmem:[#allocation11 + $0x2b0] sm:$0xff]
        %v1532 = vld [vmem:[#allocation11 + $0x2b8] sm:$0xff]
        %v1533 = vld [vmem:[#allocation11 + $0x2c0] sm:$0xff]
        %v1534 = vld [vmem:[#allocation11 + $0x2c8] sm:$0xff]
        %v1535 = vld [vmem:[#allocation11 + $0x2d0] sm:$0xff]
        %v1536 = vld [vmem:[#allocation11 + $0x2d8] sm:$0xff]
        %v1537 = vld [vmem:[#allocation11 + $0x2e0] sm:$0xff]
        %v1538 = vld [vmem:[#allocation11 + $0x2e8] sm:$0xff]
        %v1539 = vld [vmem:[#allocation11 + $0x2f0] sm:$0xff]
        %v1540 = vld [vmem:[#allocation11 + $0x2f8] sm:$0xff]
        %v1541 = vld [vmem:[#allocation11 + $0x300] sm:$0xff]
        %v1542 = vld [vmem:[#allocation11 + $0x308] sm:$0xff]
        %v1543 = vld [vmem:[#allocation11 + $0x310] sm:$0xff]
        %v1544 = vld [vmem:[#allocation11 + $0x318] sm:$0xff]
        %v1545 = vld [vmem:[#allocation11 + $0x320] sm:$0xff]
        %v1546 = vld [vmem:[#allocation11 + $0x328] sm:$0xff]
        %v1547 = vld [vmem:[#allocation11 + $0x330] sm:$0xff]
        %v1548 = vld [vmem:[#allocation11 + $0x338] sm:$0xff]
        %v1549 = vld [vmem:[#allocation11 + $0x340] sm:$0xff]
        %v1550 = vld [vmem:[#allocation11 + $0x348] sm:$0xff]
        %v1551 = vld [vmem:[#allocation11 + $0x350] sm:$0xff]
        %v1552 = vld [vmem:[#allocation11 + $0x358] sm:$0xff]
        %v1553 = vld [vmem:[#allocation11 + $0x360] sm:$0xff]
        %v1554 = vld [vmem:[#allocation11 + $0x368] sm:$0xff]
        %v1555 = vld [vmem:[#allocation11 + $0x370] sm:$0xff]
        %v1556 = vld [vmem:[#allocation11 + $0x378] sm:$0xff]
        %v1557 = vld [vmem:[#allocation11 + $0x380] sm:$0xff]
        %v1558 = vld [vmem:[#allocation11 + $0x388] sm:$0xff]
        %v1559 = vld [vmem:[#allocation11 + $0x390] sm:$0xff]
        %v1560 = vld [vmem:[#allocation11 + $0x398] sm:$0xff]
        %v1561 = vld [vmem:[#allocation11 + $0x3a0] sm:$0xff]
        %v1562 = vld [vmem:[#allocation11 + $0x3a8] sm:$0xff]
        %v1563 = vld [vmem:[#allocation11 + $0x3b0] sm:$0xff]
        %v1564 = vld [vmem:[#allocation11 + $0x3b8] sm:$0xff]
        %v1565 = vld [vmem:[#allocation11 + $0x3c0] sm:$0xff]
        %v1566 = vld [vmem:[#allocation11 + $0x3c8] sm:$0xff]
        %v1567 = vld [vmem:[#allocation11 + $0x3d0] sm:$0xff]
        %v1568 = vld [vmem:[#allocation11 + $0x3d8] sm:$0xff]
        %v1569 = vld [vmem:[#allocation11 + $0x3e0] sm:$0xff]
        %v1570 = vld [vmem:[#allocation11 + $0x3e8] sm:$0xff]
        %v1571 = vld [vmem:[#allocation11 + $0x3f0] sm:$0xff]
        %v1572 = vld [vmem:[#allocation11 + $0x3f8] sm:$0xff]
        %v1573 = vld [vmem:[#allocation11 + $0x400] sm:$0xff]
        %v1574 = vld [vmem:[#allocation11 + $0x408] sm:$0xff]
        %v1575 = vld [vmem:[#allocation11 + $0x410] sm:$0xff]
        %v1576 = vld [vmem:[#allocation11 + $0x418] sm:$0xff]
        %v1577 = vld [vmem:[#allocation11 + $0x420] sm:$0xff]
        %v1578 = vld [vmem:[#allocation11 + $0x428] sm:$0xff]
        %v1579 = vld [vmem:[#allocation11 + $0x430] sm:$0xff]
        %v1580 = vld [vmem:[#allocation11 + $0x438] sm:$0xff]
        %v1581 = vld [vmem:[#allocation11 + $0x440] sm:$0xff]
        %v1582 = vld [vmem:[#allocation11 + $0x448] sm:$0xff]
        %v1583 = vld [vmem:[#allocation11 + $0x450] sm:$0xff]
        %v1584 = vld [vmem:[#allocation11 + $0x458] sm:$0xff]
        %v1585 = vld [vmem:[#allocation11 + $0x460] sm:$0xff]
        %v1586 = vld [vmem:[#allocation11 + $0x468] sm:$0xff]
        %v1587 = vld [vmem:[#allocation11 + $0x470] sm:$0xff]
        %v1588 = vld [vmem:[#allocation11 + $0x478] sm:$0xff]
        %v1589 = vld [vmem:[#allocation11 + $0x480] sm:$0xff]
        %v1590 = vld [vmem:[#allocation11 + $0x488] sm:$0xff]
        %v1591 = vld [vmem:[#allocation11 + $0x490] sm:$0xff]
        %v1592 = vld [vmem:[#allocation11 + $0x498] sm:$0xff]
        %v1593 = vld [vmem:[#allocation11 + $0x4a0] sm:$0xff]
        %v1594 = vld [vmem:[#allocation11 + $0x4a8] sm:$0xff]
        %v1595 = vld [vmem:[#allocation11 + $0x4b0] sm:$0xff]
        %v1596 = vld [vmem:[#allocation11 + $0x4b8] sm:$0xff]
        %v1597 = vld [vmem:[#allocation11 + $0x4c0] sm:$0xff]
        %v1598 = vld [vmem:[#allocation11 + $0x4c8] sm:$0xff]
        %v1599 = vld [vmem:[#allocation11 + $0x4d0] sm:$0xff]
        %v1600 = vld [vmem:[#allocation11 + $0x4d8] sm:$0xff]
        %v1601 = vld [vmem:[#allocation11 + $0x4e0] sm:$0xff]
        %v1602 = vld [vmem:[#allocation11 + $0x4e8] sm:$0xff]
        %v1603 = vld [vmem:[#allocation11 + $0x4f0] sm:$0xff]
        %v1604 = vld [vmem:[#allocation11 + $0x4f8] sm:$0xff]
        %v1605 = vld [vmem:[#allocation11 + $0x500] sm:$0xff]
        %v1606 = vld [vmem:[#allocation11 + $0x508] sm:$0xff]
        %v1607 = vld [vmem:[#allocation11 + $0x510] sm:$0xff]
        %v1608 = vld [vmem:[#allocation11 + $0x518] sm:$0xff]
        %v1609 = vld [vmem:[#allocation11 + $0x520] sm:$0xff]
        %v1610 = vld [vmem:[#allocation11 + $0x528] sm:$0xff]
        %v1611 = vld [vmem:[#allocation11 + $0x530] sm:$0xff]
        %v1612 = vld [vmem:[#allocation11 + $0x538] sm:$0xff]
        %v1613 = vld [vmem:[#allocation11 + $0x540] sm:$0xff]
        %v1614 = vld [vmem:[#allocation11 + $0x548] sm:$0xff]
        %v1615 = vld [vmem:[#allocation11 + $0x550] sm:$0xff]
        %v1616 = vld [vmem:[#allocation11 + $0x558] sm:$0xff]
        %v1617 = vld [vmem:[#allocation11 + $0x560] sm:$0xff]
        %v1618 = vld [vmem:[#allocation11 + $0x568] sm:$0xff]
        %v1619 = vld [vmem:[#allocation11 + $0x570] sm:$0xff]
        %v1620 = vld [vmem:[#allocation11 + $0x578] sm:$0xff]
        %v1621 = vld [vmem:[#allocation11 + $0x580] sm:$0xff]
        %v1622 = vld [vmem:[#allocation11 + $0x588] sm:$0xff]
        %v1623 = vld [vmem:[#allocation11 + $0x590] sm:$0xff]
        %v1624 = vld [vmem:[#allocation11 + $0x598] sm:$0xff]
        %v1625 = vld [vmem:[#allocation11 + $0x5a0] sm:$0xff]
        %v1626 = vld [vmem:[#allocation11 + $0x5a8] sm:$0xff]
        %v1627 = vld [vmem:[#allocation11 + $0x5b0] sm:$0xff]
        %v1628 = vld [vmem:[#allocation11 + $0x5b8] sm:$0xff]
        %v1629 = vld [vmem:[#allocation11 + $0x5c0] sm:$0xff]
        %v1630 = vld [vmem:[#allocation11 + $0x5c8] sm:$0xff]
        %v1631 = vld [vmem:[#allocation11 + $0x5d0] sm:$0xff]
        %v1632 = vld [vmem:[#allocation11 + $0x5d8] sm:$0xff]
        %v1633 = vld [vmem:[#allocation11 + $0x5e0] sm:$0xff]
        %v1634 = vld [vmem:[#allocation11 + $0x5e8] sm:$0xff]
        %v1635 = vld [vmem:[#allocation11 + $0x5f0] sm:$0xff]
        %v1636 = vld [vmem:[#allocation11 + $0x5f8] sm:$0xff]
        %v1637 = vld [vmem:[#allocation11 + $0x600] sm:$0xff]
        %v1638 = vld [vmem:[#allocation11 + $0x608] sm:$0xff]
        %v1639 = vld [vmem:[#allocation11 + $0x610] sm:$0xff]
        %v1640 = vld [vmem:[#allocation11 + $0x618] sm:$0xff]
        %v1641 = vld [vmem:[#allocation11 + $0x620] sm:$0xff]
        %v1642 = vld [vmem:[#allocation11 + $0x628] sm:$0xff]
        %v1643 = vld [vmem:[#allocation11 + $0x630] sm:$0xff]
        %v1644 = vld [vmem:[#allocation11 + $0x638] sm:$0xff]
        %v1645 = vld [vmem:[#allocation11 + $0x640] sm:$0xff]
        %v1646 = vld [vmem:[#allocation11 + $0x648] sm:$0xff]
        %v1647 = vld [vmem:[#allocation11 + $0x650] sm:$0xff]
        %v1648 = vld [vmem:[#allocation11 + $0x658] sm:$0xff]
        %v1649 = vld [vmem:[#allocation11 + $0x660] sm:$0xff]
        %v1650 = vld [vmem:[#allocation11 + $0x668] sm:$0xff]
        %v1651 = vld [vmem:[#allocation11 + $0x670] sm:$0xff]
        %v1652 = vld [vmem:[#allocation11 + $0x678] sm:$0xff]
        %v1653 = vld [vmem:[#allocation11 + $0x680] sm:$0xff]
        %v1654 = vld [vmem:[#allocation11 + $0x688] sm:$0xff]
        %v1655 = vld [vmem:[#allocation11 + $0x690] sm:$0xff]
        %v1656 = vld [vmem:[#allocation11 + $0x698] sm:$0xff]
        %v1657 = vld [vmem:[#allocation11 + $0x6a0] sm:$0xff]
        %v1658 = vld [vmem:[#allocation11 + $0x6a8] sm:$0xff]
        %v1659 = vld [vmem:[#allocation11 + $0x6b0] sm:$0xff]
        %v1660 = vld [vmem:[#allocation11 + $0x6b8] sm:$0xff]
        %v1661 = vld [vmem:[%s8] sm:$0x3]
        %v1662 = vld [vmem:[%s9] sm:$0x3]
        %v1663 = vld [vmem:[#allocation13] sm:$0x3]
        %1666 = vrot.lane.b32.xlu0 %v1441, 112
        %v1667 = vpop.permute.xlu0 %1666
        %1668 = vrot.lane.b32.xlu0 %v1443, 112
        %v1669 = vpop.permute.xlu0 %1668
        %1674 = vrot.lane.b32.xlu0 %v1441, 16
        %v1675 = vpop.permute.xlu0 %1674
        %1676 = vrot.lane.b32.xlu0 %v1442, 16
        %v1677 = vpop.permute.xlu0 %1676
        %1678 = vrot.lane.b32.xlu0 %v1443, 16
        %v1679 = vpop.permute.xlu0 %1678
        %1680 = vrot.lane.b32.xlu0 %v1444, 16
        %v1681 = vpop.permute.xlu0 %1680
        %v1682 = vsel %vm919, %v1675, %v1677
        %v1683 = vsel %vm919, %v1679, %v1681
        %1688 = vrot.lane.b32.xlu0 %v1442, 48
        %v1689 = vpop.permute.xlu0 %1688
        %1690 = vrot.lane.b32.xlu0 %v1444, 48
        %v1691 = vpop.permute.xlu0 %1690
        %v1694 = vsel %vm919, %v1667, %v1675
        %v1695 = vsel %vm919, %v1669, %v1679
        %v1696 = vsel %vm919, %v1677, %v1689
        %v1697 = vsel %vm919, %v1681, %v1691
        %v1700 = vrot.slane %v1694, 1
        %v1701 = vrot.slane %v1682, 1
        %v1702 = vrot.slane %v1696, 1
        %v1708 = vrot.slane %v1694, 7
        %v1709 = vrot.slane %v1682, 7
        %v1710 = vrot.slane %v1696, 7
        %v1711 = vrot.slane %v1695, 7
        %v1712 = vsel %vm879, %v1708, %v1711
        %v1713 = vrot.slane %v1683, 7
        %v1714 = vsel %vm879, %v1709, %v1713
        %v1715 = vrot.slane %v1697, 7
        %v1716 = vsel %vm879, %v1710, %v1715
        %v1726 = vrot.slane %v1695, 5
        %v1727 = vrot.slane %v1683, 5
        %v1728 = vrot.slane %v1697, 5
        %v1732 = vsel %vm879, %v1700, %v1708
        %v1733 = vsel %vm879, %v1701, %v1709
        %v1734 = vsel %vm879, %v1702, %v1710
        %v1735 = vsel %vm879, %v1711, %v1726
        %v1736 = vsel %vm879, %v1713, %v1727
        %v1737 = vsel %vm879, %v1715, %v1728
        %v1744 = vrot.slane %v1732, 1
        %v1745 = vrot.slane %v1712, 1
        %v1746 = vsel %vm892, %v1744, %v1745
        %v1747 = vrot.slane %v1733, 1
        %v1748 = vrot.slane %v1714, 1
        %v1749 = vsel %vm892, %v1747, %v1748
        %v1750 = vrot.slane %v1734, 1
        %v1751 = vrot.slane %v1716, 1
        %v1752 = vsel %vm892, %v1750, %v1751
        %v1753 = vrot.slane %v1735, 1
        %v1754 = vsel %vm892, %v1745, %v1753
        %v1755 = vrot.slane %v1736, 1
        %v1756 = vsel %vm892, %v1748, %v1755
        %v1757 = vrot.slane %v1737, 1
        %v1758 = vsel %vm892, %v1751, %v1757
        %1759 = vrot.lane.b32.xlu0 %v1746, 32
        %v1760 = vpop.permute.xlu0 %1759
        %1761 = vrot.lane.b32.xlu0 %v1749, 32
        %v1762 = vpop.permute.xlu0 %1761
        %1763 = vrot.lane.b32.xlu0 %v1752, 32
        %v1764 = vpop.permute.xlu0 %1763
        %1765 = vrot.lane.b32.xlu0 %v1754, 32
        %v1766 = vpop.permute.xlu0 %1765
        %1767 = vrot.lane.b32.xlu0 %v1756, 32
        %v1768 = vpop.permute.xlu0 %1767
        %1769 = vrot.lane.b32.xlu0 %v1758, 32
        %v1770 = vpop.permute.xlu0 %1769
        %vm1771 = vcmask 261120
        %v1772 = vsel %vm1771, %v1760, %v1762
        %v1773 = vsel %vm1771, %v1762, %v1764
        %v1774 = vsel %vm1771, %v1766, %v1768
        %v1775 = vsel %vm1771, %v1768, %v1770
        %v1782 = vrot.slane %v1732, 2
        %v1783 = vrot.slane %v1712, 2
        %v1784 = vsel %vm904, %v1782, %v1783
        %v1785 = vrot.slane %v1733, 2
        %v1786 = vrot.slane %v1714, 2
        %v1787 = vsel %vm904, %v1785, %v1786
        %v1788 = vrot.slane %v1734, 2
        %v1789 = vrot.slane %v1716, 2
        %v1790 = vsel %vm904, %v1788, %v1789
        %v1791 = vrot.slane %v1735, 2
        %v1792 = vsel %vm904, %v1783, %v1791
        %v1793 = vrot.slane %v1736, 2
        %v1794 = vsel %vm904, %v1786, %v1793
        %v1795 = vrot.slane %v1737, 2
        %v1796 = vsel %vm904, %v1789, %v1795
        %1797 = vrot.lane.b32.xlu0 %v1784, 64
        %v1798 = vpop.permute.xlu0 %1797
        %1799 = vrot.lane.b32.xlu0 %v1787, 64
        %v1800 = vpop.permute.xlu0 %1799
        %1801 = vrot.lane.b32.xlu0 %v1790, 64
        %v1802 = vpop.permute.xlu0 %1801
        %1803 = vrot.lane.b32.xlu0 %v1792, 64
        %v1804 = vpop.permute.xlu0 %1803
        %1805 = vrot.lane.b32.xlu0 %v1794, 64
        %v1806 = vpop.permute.xlu0 %1805
        %1807 = vrot.lane.b32.xlu0 %v1796, 64
        %v1808 = vpop.permute.xlu0 %1807
        %vm1809 = vcmask 523264
        %v1810 = vsel %vm1809, %v1798, %v1800
        %v1811 = vsel %vm1809, %v1800, %v1802
        %v1812 = vsel %vm1809, %v1804, %v1806
        %v1813 = vsel %vm1809, %v1806, %v1808
        %v1818 = vsel %vm1771, %v1734, %v1760
        %v1819 = vsel %vm1771, %v1716, %v1766
        %v1820 = vsel %vm1809, %v1773, %v1798
        %v1821 = vsel %vm1809, %v1775, %v1804
        %v1823 = vperm.slane %v1661, 0
        %v1824 = vperm.slane %v1661, 1
        %vm1827 = vcmask 785408
        %v1828 = vsel %vm1827, %v1811, 0
        %v1830 = vsel %vm1827, %v1813, 0
        %1832 = vmatpush.msra.mxu0 %v1475
        %1833 = vmatpush.msra.mxu0 %v1473
        %1834 = vmatpush.msra.mxu0 %v1471
        %1835 = vmatpush.msra.mxu0 %v1469
        %1836 = vmatpush.msra.mxu0 %v1467
        %1837 = vmatpush.msra.mxu0 %v1465
        %1838 = vmatpush.msra.mxu0 %v1463
        %1839 = vmatpush.msra.mxu0 %v1461
        %1840 = vmatpush.msra.mxu0 %v1459
        %1841 = vmatpush.msra.mxu0 %v1457
        %1842 = vmatpush.msra.mxu0 %v1455
        %1843 = vmatpush.msra.mxu0 %v1453
        %1844 = vmatpush.msra.mxu0 %v1451
        %1845 = vmatpush.msra.mxu0 %v1449
        %1846 = vmatpush.msra.mxu0 %v1447
        %1847 = vmatpush.msra.mxu0 %v1445
        %1848 = vmatmul.f32.gmra.mxu0 %v1732
        %v1849 = vpop.f32.mrf.mxu0
        %v1850 = vadd.f32 %v1823, %v1849
        %1851 = vmatmul.f32.gmra.mxu0 %v1712
        %v1852 = vpop.f32.mrf.mxu0
        %v1853 = vadd.f32 %v1823, %v1852
        %1854 = vdwg.mxu0
        %1855 = vmatpush.msra.mxu0 %v1507
        %1856 = vmatpush.msra.mxu0 %v1505
        %1857 = vmatpush.msra.mxu0 %v1503
        %1858 = vmatpush.msra.mxu0 %v1501
        %1859 = vmatpush.msra.mxu0 %v1499
        %1860 = vmatpush.msra.mxu0 %v1497
        %1861 = vmatpush.msra.mxu0 %v1495
        %1862 = vmatpush.msra.mxu0 %v1493
        %1863 = vmatpush.msra.mxu0 %v1491
        %1864 = vmatpush.msra.mxu0 %v1489
        %1865 = vmatpush.msra.mxu0 %v1487
        %1866 = vmatpush.msra.mxu0 %v1485
        %1867 = vmatpush.msra.mxu0 %v1483
        %1868 = vmatpush.msra.mxu0 %v1481
        %1869 = vmatpush.msra.mxu0 %v1479
        %1870 = vmatpush.msra.mxu0 %v1477
        %1871 = vmatmul.f32.gmra.mxu0 %v1733
        %v1872 = vpop.f32.mrf.mxu0
        %v1873 = vadd.f32 %v1850, %v1872
        %1874 = vmatmul.f32.gmra.mxu0 %v1714
        %v1875 = vpop.f32.mrf.mxu0
        %v1876 = vadd.f32 %v1853, %v1875
        %1877 = vdwg.mxu0
        %1878 = vmatpush.msra.mxu0 %v1539
        %1879 = vmatpush.msra.mxu0 %v1537
        %1880 = vmatpush.msra.mxu0 %v1535
        %1881 = vmatpush.msra.mxu0 %v1533
        %1882 = vmatpush.msra.mxu0 %v1531
        %1883 = vmatpush.msra.mxu0 %v1529
        %1884 = vmatpush.msra.mxu0 %v1527
        %1885 = vmatpush.msra.mxu0 %v1525
        %1886 = vmatpush.msra.mxu0 %v1523
        %1887 = vmatpush.msra.mxu0 %v1521
        %1888 = vmatpush.msra.mxu0 %v1519
        %1889 = vmatpush.msra.mxu0 %v1517
        %1890 = vmatpush.msra.mxu0 %v1515
        %1891 = vmatpush.msra.mxu0 %v1513
        %1892 = vmatpush.msra.mxu0 %v1511
        %1893 = vmatpush.msra.mxu0 %v1509
        %1894 = vmatmul.f32.gmra.mxu0 %v1818
        %v1895 = vpop.f32.mrf.mxu0
        %v1896 = vadd.f32 %v1873, %v1895
        %1897 = vmatmul.f32.gmra.mxu0 %v1819
        %v1898 = vpop.f32.mrf.mxu0
        %v1899 = vadd.f32 %v1876, %v1898
        %1900 = vdwg.mxu0
        %1901 = vmatpush.msra.mxu0 %v1571
        %1902 = vmatpush.msra.mxu0 %v1569
        %1903 = vmatpush.msra.mxu0 %v1567
        %1904 = vmatpush.msra.mxu0 %v1565
        %1905 = vmatpush.msra.mxu0 %v1563
        %1906 = vmatpush.msra.mxu0 %v1561
        %1907 = vmatpush.msra.mxu0 %v1559
        %1908 = vmatpush.msra.mxu0 %v1557
        %1909 = vmatpush.msra.mxu0 %v1555
        %1910 = vmatpush.msra.mxu0 %v1553
        %1911 = vmatpush.msra.mxu0 %v1551
        %1912 = vmatpush.msra.mxu0 %v1549
        %1913 = vmatpush.msra.mxu0 %v1547
        %1914 = vmatpush.msra.mxu0 %v1545
        %1915 = vmatpush.msra.mxu0 %v1543
        %1916 = vmatpush.msra.mxu0 %v1541
        %1917 = vmatmul.f32.gmra.mxu0 %v1772
        %v1918 = vpop.f32.mrf.mxu0
        %v1919 = vadd.f32 %v1896, %v1918
        %1920 = vmatmul.f32.gmra.mxu0 %v1774
        %v1921 = vpop.f32.mrf.mxu0
        %v1922 = vadd.f32 %v1899, %v1921
        %1923 = vdwg.mxu0
        %1924 = vmatpush.msra.mxu0 %v1603
        %1925 = vmatpush.msra.mxu0 %v1601
        %1926 = vmatpush.msra.mxu0 %v1599
        %1927 = vmatpush.msra.mxu0 %v1597
        %1928 = vmatpush.msra.mxu0 %v1595
        %1929 = vmatpush.msra.mxu0 %v1593
        %1930 = vmatpush.msra.mxu0 %v1591
        %1931 = vmatpush.msra.mxu0 %v1589
        %1932 = vmatpush.msra.mxu0 %v1587
        %1933 = vmatpush.msra.mxu0 %v1585
        %1934 = vmatpush.msra.mxu0 %v1583
        %1935 = vmatpush.msra.mxu0 %v1581
        %1936 = vmatpush.msra.mxu0 %v1579
        %1937 = vmatpush.msra.mxu0 %v1577
        %1938 = vmatpush.msra.mxu0 %v1575
        %1939 = vmatpush.msra.mxu0 %v1573
        %1940 = vmatmul.f32.gmra.mxu0 %v1820
        %v1941 = vpop.f32.mrf.mxu0
        %v1942 = vadd.f32 %v1919, %v1941
        %1943 = vmatmul.f32.gmra.mxu0 %v1821
        %v1944 = vpop.f32.mrf.mxu0
        %v1945 = vadd.f32 %v1922, %v1944
        %1946 = vdwg.mxu0
        %1947 = vmatpush.msra.mxu0 %v1635
        %1948 = vmatpush.msra.mxu0 %v1633
        %1949 = vmatpush.msra.mxu0 %v1631
        %1950 = vmatpush.msra.mxu0 %v1629
        %1951 = vmatpush.msra.mxu0 %v1627
        %1952 = vmatpush.msra.mxu0 %v1625
        %1953 = vmatpush.msra.mxu0 %v1623
        %1954 = vmatpush.msra.mxu0 %v1621
        %1955 = vmatpush.msra.mxu0 %v1619
        %1956 = vmatpush.msra.mxu0 %v1617
        %1957 = vmatpush.msra.mxu0 %v1615
        %1958 = vmatpush.msra.mxu0 %v1613
        %1959 = vmatpush.msra.mxu0 %v1611
        %1960 = vmatpush.msra.mxu0 %v1609
        %1961 = vmatpush.msra.mxu0 %v1607
        %1962 = vmatpush.msra.mxu0 %v1605
        %1963 = vmatmul.f32.gmra.mxu0 %v1810
        %v1964 = vpop.f32.mrf.mxu0
        %v1965 = vadd.f32 %v1942, %v1964
        %1966 = vmatmul.f32.gmra.mxu0 %v1812
        %v1967 = vpop.f32.mrf.mxu0
        %v1968 = vadd.f32 %v1945, %v1967
        %1969 = vdwg.mxu0
        %1970 = vmatpush.msra.mxu0 0.0
        %1971 = vmatpush.msra.mxu0 0.0
        %1972 = vmatpush.msra.mxu0 0.0
        %1973 = vmatpush.msra.mxu0 0.0
        %1974 = vmatpush.msra.mxu0 %v1659
        %1975 = vmatpush.msra.mxu0 %v1657
        %1976 = vmatpush.msra.mxu0 %v1655
        %1977 = vmatpush.msra.mxu0 %v1653
        %1978 = vmatpush.msra.mxu0 %v1651
        %1979 = vmatpush.msra.mxu0 %v1649
        %1980 = vmatpush.msra.mxu0 %v1647
        %1981 = vmatpush.msra.mxu0 %v1645
        %1982 = vmatpush.msra.mxu0 %v1643
        %1983 = vmatpush.msra.mxu0 %v1641
        %1984 = vmatpush.msra.mxu0 %v1639
        %1985 = vmatpush.msra.mxu0 %v1637
        %1986 = vmatmul.f32.gmra.mxu0 %v1828
        %v1987 = vpop.f32.mrf.mxu0
        %v1988 = vadd.f32 %v1965, %v1987
        %1989 = vmatmul.f32.gmra.mxu0 %v1830
        %v1990 = vpop.f32.mrf.mxu0
        %v1991 = vadd.f32 %v1968, %v1990
        %1992 = vdwg.mxu0
        %1993 = vmatpush.msra.mxu0 %v1476
        %1994 = vmatpush.msra.mxu0 %v1474
        %1995 = vmatpush.msra.mxu0 %v1472
        %1996 = vmatpush.msra.mxu0 %v1470
        %1997 = vmatpush.msra.mxu0 %v1468
        %1998 = vmatpush.msra.mxu0 %v1466
        %1999 = vmatpush.msra.mxu0 %v1464
        %2000 = vmatpush.msra.mxu0 %v1462
        %2001 = vmatpush.msra.mxu0 %v1460
        %2002 = vmatpush.msra.mxu0 %v1458
        %2003 = vmatpush.msra.mxu0 %v1456
        %2004 = vmatpush.msra.mxu0 %v1454
        %2005 = vmatpush.msra.mxu0 %v1452
        %2006 = vmatpush.msra.mxu0 %v1450
        %2007 = vmatpush.msra.mxu0 %v1448
        %2008 = vmatpush.msra.mxu0 %v1446
        %2009 = vmatmul.f32.gmra.mxu0 %v1732
        %v2010 = vpop.f32.mrf.mxu0
        %v2011 = vadd.f32 %v1824, %v2010
        %2012 = vmatmul.f32.gmra.mxu0 %v1712
        %v2013 = vpop.f32.mrf.mxu0
        %v2014 = vadd.f32 %v1824, %v2013
        %2015 = vdwg.mxu0
        %2016 = vmatpush.msra.mxu0 %v1508
        %2017 = vmatpush.msra.mxu0 %v1506
        %2018 = vmatpush.msra.mxu0 %v1504
        %2019 = vmatpush.msra.mxu0 %v1502
        %2020 = vmatpush.msra.mxu0 %v1500
        %2021 = vmatpush.msra.mxu0 %v1498
        %2022 = vmatpush.msra.mxu0 %v1496
        %2023 = vmatpush.msra.mxu0 %v1494
        %2024 = vmatpush.msra.mxu0 %v1492
        %2025 = vmatpush.msra.mxu0 %v1490
        %2026 = vmatpush.msra.mxu0 %v1488
        %2027 = vmatpush.msra.mxu0 %v1486
        %2028 = vmatpush.msra.mxu0 %v1484
        %2029 = vmatpush.msra.mxu0 %v1482
        %2030 = vmatpush.msra.mxu0 %v1480
        %2031 = vmatpush.msra.mxu0 %v1478
        %2032 = vmatmul.f32.gmra.mxu0 %v1733
        %v2033 = vpop.f32.mrf.mxu0
        %v2034 = vadd.f32 %v2011, %v2033
        %2035 = vmatmul.f32.gmra.mxu0 %v1714
        %v2036 = vpop.f32.mrf.mxu0
        %v2037 = vadd.f32 %v2014, %v2036
        %2038 = vdwg.mxu0
        %2039 = vmatpush.msra.mxu0 %v1540
        %2040 = vmatpush.msra.mxu0 %v1538
        %2041 = vmatpush.msra.mxu0 %v1536
        %2042 = vmatpush.msra.mxu0 %v1534
        %2043 = vmatpush.msra.mxu0 %v1532
        %2044 = vmatpush.msra.mxu0 %v1530
        %2045 = vmatpush.msra.mxu0 %v1528
        %2046 = vmatpush.msra.mxu0 %v1526
        %2047 = vmatpush.msra.mxu0 %v1524
        %2048 = vmatpush.msra.mxu0 %v1522
        %2049 = vmatpush.msra.mxu0 %v1520
        %2050 = vmatpush.msra.mxu0 %v1518
        %2051 = vmatpush.msra.mxu0 %v1516
        %2052 = vmatpush.msra.mxu0 %v1514
        %2053 = vmatpush.msra.mxu0 %v1512
        %2054 = vmatpush.msra.mxu0 %v1510
        %2055 = vmatmul.f32.gmra.mxu0 %v1818
        %v2056 = vpop.f32.mrf.mxu0
        %v2057 = vadd.f32 %v2034, %v2056
        %2058 = vmatmul.f32.gmra.mxu0 %v1819
        %v2059 = vpop.f32.mrf.mxu0
        %v2060 = vadd.f32 %v2037, %v2059
        %2061 = vdwg.mxu0
        %2062 = vmatpush.msra.mxu0 %v1572
        %2063 = vmatpush.msra.mxu0 %v1570
        %2064 = vmatpush.msra.mxu0 %v1568
        %2065 = vmatpush.msra.mxu0 %v1566
        %2066 = vmatpush.msra.mxu0 %v1564
        %2067 = vmatpush.msra.mxu0 %v1562
        %2068 = vmatpush.msra.mxu0 %v1560
        %2069 = vmatpush.msra.mxu0 %v1558
        %2070 = vmatpush.msra.mxu0 %v1556
        %2071 = vmatpush.msra.mxu0 %v1554
        %2072 = vmatpush.msra.mxu0 %v1552
        %2073 = vmatpush.msra.mxu0 %v1550
        %2074 = vmatpush.msra.mxu0 %v1548
        %2075 = vmatpush.msra.mxu0 %v1546
        %2076 = vmatpush.msra.mxu0 %v1544
        %2077 = vmatpush.msra.mxu0 %v1542
        %2078 = vmatmul.f32.gmra.mxu0 %v1772
        %v2079 = vpop.f32.mrf.mxu0
        %v2080 = vadd.f32 %v2057, %v2079
        %2081 = vmatmul.f32.gmra.mxu0 %v1774
        %v2082 = vpop.f32.mrf.mxu0
        %v2083 = vadd.f32 %v2060, %v2082
        %2084 = vdwg.mxu0
        %2085 = vmatpush.msra.mxu0 %v1604
        %2086 = vmatpush.msra.mxu0 %v1602
        %2087 = vmatpush.msra.mxu0 %v1600
        %2088 = vmatpush.msra.mxu0 %v1598
        %2089 = vmatpush.msra.mxu0 %v1596
        %2090 = vmatpush.msra.mxu0 %v1594
        %2091 = vmatpush.msra.mxu0 %v1592
        %2092 = vmatpush.msra.mxu0 %v1590
        %2093 = vmatpush.msra.mxu0 %v1588
        %2094 = vmatpush.msra.mxu0 %v1586
        %2095 = vmatpush.msra.mxu0 %v1584
        %2096 = vmatpush.msra.mxu0 %v1582
        %2097 = vmatpush.msra.mxu0 %v1580
        %2098 = vmatpush.msra.mxu0 %v1578
        %2099 = vmatpush.msra.mxu0 %v1576
        %2100 = vmatpush.msra.mxu0 %v1574
        %2101 = vmatmul.f32.gmra.mxu0 %v1820
        %v2102 = vpop.f32.mrf.mxu0
        %v2103 = vadd.f32 %v2080, %v2102
        %2104 = vmatmul.f32.gmra.mxu0 %v1821
        %v2105 = vpop.f32.mrf.mxu0
        %v2106 = vadd.f32 %v2083, %v2105
        %2107 = vdwg.mxu0
        %2108 = vmatpush.msra.mxu0 %v1636
        %2109 = vmatpush.msra.mxu0 %v1634
        %2110 = vmatpush.msra.mxu0 %v1632
        %2111 = vmatpush.msra.mxu0 %v1630
        %2112 = vmatpush.msra.mxu0 %v1628
        %2113 = vmatpush.msra.mxu0 %v1626
        %2114 = vmatpush.msra.mxu0 %v1624
        %2115 = vmatpush.msra.mxu0 %v1622
        %2116 = vmatpush.msra.mxu0 %v1620
        %2117 = vmatpush.msra.mxu0 %v1618
        %2118 = vmatpush.msra.mxu0 %v1616
        %2119 = vmatpush.msra.mxu0 %v1614
        %2120 = vmatpush.msra.mxu0 %v1612
        %2121 = vmatpush.msra.mxu0 %v1610
        %2122 = vmatpush.msra.mxu0 %v1608
        %2123 = vmatpush.msra.mxu0 %v1606
        %2124 = vmatmul.f32.gmra.mxu0 %v1810
        %v2125 = vpop.f32.mrf.mxu0
        %v2126 = vadd.f32 %v2103, %v2125
        %2127 = vmatmul.f32.gmra.mxu0 %v1812
        %v2128 = vpop.f32.mrf.mxu0
        %v2129 = vadd.f32 %v2106, %v2128
        %2130 = vdwg.mxu0
        %2131 = vmatpush.msra.mxu0 0.0
        %2132 = vmatpush.msra.mxu0 0.0
        %2133 = vmatpush.msra.mxu0 0.0
        %2134 = vmatpush.msra.mxu0 0.0
        %2135 = vmatpush.msra.mxu0 %v1660
        %2136 = vmatpush.msra.mxu0 %v1658
        %2137 = vmatpush.msra.mxu0 %v1656
        %2138 = vmatpush.msra.mxu0 %v1654
        %2139 = vmatpush.msra.mxu0 %v1652
        %2140 = vmatpush.msra.mxu0 %v1650
        %2141 = vmatpush.msra.mxu0 %v1648
        %2142 = vmatpush.msra.mxu0 %v1646
        %2143 = vmatpush.msra.mxu0 %v1644
        %2144 = vmatpush.msra.mxu0 %v1642
        %2145 = vmatpush.msra.mxu0 %v1640
        %2146 = vmatpush.msra.mxu0 %v1638
        %2147 = vmatmul.f32.gmra.mxu0 %v1828
        %v2148 = vpop.f32.mrf.mxu0
        %v2149 = vadd.f32 %v2126, %v2148
        %2150 = vmatmul.f32.gmra.mxu0 %v1830
        %v2151 = vpop.f32.mrf.mxu0
        %v2152 = vadd.f32 %v2129, %v2151
        %2153 = vdwg.mxu0
        %v2154 = vadd.f32 %v1988, %v1991
        %v2155 = vrot.slane %v2154, 4
        %v2156 = vadd.f32 %v2154, %v2155
        %v2157 = vrot.slane %v2156, 2
        %v2158 = vadd.f32 %v2156, %v2157
        %v2159 = vrot.slane %v2158, 1
        %v2160 = vadd.f32 %v2158, %v2159
        %v2161 = vadd.f32 %v2149, %v2152
        %v2162 = vrot.slane %v2161, 4
        %v2163 = vadd.f32 %v2161, %v2162
        %v2164 = vrot.slane %v2163, 2
        %v2165 = vadd.f32 %v2163, %v2164
        %v2166 = vrot.slane %v2165, 1
        %v2167 = vadd.f32 %v2165, %v2166
        %2168 = vmatpush.msra.mxu0 %v758
        %2169 = vmatpush.msra.mxu0 %v756
        %2170 = vmatpush.msra.mxu0 %v754
        %2171 = vmatpush.msra.mxu0 %v752
        %2172 = vmatpush.msra.mxu0 %v750
        %2173 = vmatpush.msra.mxu0 %v748
        %2174 = vmatpush.msra.mxu0 %v746
        %2175 = vmatpush.msra.mxu0 %v744
        %2176 = vmatpush.msra.mxu0 %v742
        %2177 = vmatpush.msra.mxu0 %v740
        %2178 = vmatpush.msra.mxu0 %v738
        %2179 = vmatpush.msra.mxu0 %v736
        %2180 = vmatpush.msra.mxu0 %v734
        %2181 = vmatpush.msra.mxu0 %v732
        %2182 = vmatpush.msra.mxu0 %v730
        %2183 = vmatpush.msra.mxu0 %v728
        %2184 = vmatmul.f32.gmra.mxu0 %v2160
        %v2185 = vpop.f32.mrf.mxu0
        %v2186 = vadd.f32 0.0, %v2185
        %2187 = vdwg.mxu0
        %2188 = vmatpush.msra.mxu0 %v790
        %2189 = vmatpush.msra.mxu0 %v788
        %2190 = vmatpush.msra.mxu0 %v786
        %2191 = vmatpush.msra.mxu0 %v784
        %2192 = vmatpush.msra.mxu0 %v782
        %2193 = vmatpush.msra.mxu0 %v780
        %2194 = vmatpush.msra.mxu0 %v778
        %2195 = vmatpush.msra.mxu0 %v776
        %2196 = vmatpush.msra.mxu0 %v774
        %2197 = vmatpush.msra.mxu0 %v772
        %2198 = vmatpush.msra.mxu0 %v770
        %2199 = vmatpush.msra.mxu0 %v768
        %2200 = vmatpush.msra.mxu0 %v766
        %2201 = vmatpush.msra.mxu0 %v764
        %2202 = vmatpush.msra.mxu0 %v762
        %2203 = vmatpush.msra.mxu0 %v760
        %2204 = vmatmul.f32.gmra.mxu0 %v2167
        %v2205 = vpop.f32.mrf.mxu0
        %v2206 = vadd.f32 %v2186, %v2205
        %2207 = vdwg.mxu0
        %2208 = vmatpush.msra.mxu0 %v759
        %2209 = vmatpush.msra.mxu0 %v757
        %2210 = vmatpush.msra.mxu0 %v755
        %2211 = vmatpush.msra.mxu0 %v753
        %2212 = vmatpush.msra.mxu0 %v751
        %2213 = vmatpush.msra.mxu0 %v749
        %2214 = vmatpush.msra.mxu0 %v747
        %2215 = vmatpush.msra.mxu0 %v745
        %2216 = vmatpush.msra.mxu0 %v743
        %2217 = vmatpush.msra.mxu0 %v741
        %2218 = vmatpush.msra.mxu0 %v739
        %2219 = vmatpush.msra.mxu0 %v737
        %2220 = vmatpush.msra.mxu0 %v735
        %2221 = vmatpush.msra.mxu0 %v733
        %2222 = vmatpush.msra.mxu0 %v731
        %2223 = vmatpush.msra.mxu0 %v729
        %2224 = vmatmul.f32.gmra.mxu0 %v2160
        %v2225 = vpop.f32.mrf.mxu0
        %v2226 = vadd.f32 0.0, %v2225
        %2227 = vdwg.mxu0
        %2228 = vmatpush.msra.mxu0 %v791
        %2229 = vmatpush.msra.mxu0 %v789
        %2230 = vmatpush.msra.mxu0 %v787
        %2231 = vmatpush.msra.mxu0 %v785
        %2232 = vmatpush.msra.mxu0 %v783
        %2233 = vmatpush.msra.mxu0 %v781
        %2234 = vmatpush.msra.mxu0 %v779
        %2235 = vmatpush.msra.mxu0 %v777
        %2236 = vmatpush.msra.mxu0 %v775
        %2237 = vmatpush.msra.mxu0 %v773
        %2238 = vmatpush.msra.mxu0 %v771
        %2239 = vmatpush.msra.mxu0 %v769
        %2240 = vmatpush.msra.mxu0 %v767
        %2241 = vmatpush.msra.mxu0 %v765
        %2242 = vmatpush.msra.mxu0 %v763
        %2243 = vmatpush.msra.mxu0 %v761
        %2244 = vmatmul.f32.gmra.mxu0 %v2167
        %v2245 = vpop.f32.mrf.mxu0
        %v2246 = vadd.f32 %v2226, %v2245
        %2247 = vdwg.mxu0
        %v2248 = vperm.slane %v2206, 0
        %v2249 = vperm.slane %v2246, 0
        %v2250 = vsub.f32 %v1988, %v2248
        %v2251 = vsub.f32 %v2149, %v2249
        %v2252 = vsub.f32 %v1991, %v2248
        %v2253 = vsub.f32 %v2152, %v2249
        %v2254 = vmul.f32 %v2250, %v2250
        %v2255 = vmul.f32 %v2251, %v2251
        %v2256 = vmul.f32 %v2252, %v2252
        %v2257 = vmul.f32 %v2253, %v2253
        %v2258 = vadd.f32 %v2254, %v2256
        %v2259 = vrot.slane %v2258, 4
        %v2260 = vadd.f32 %v2258, %v2259
        %v2261 = vrot.slane %v2260, 2
        %v2262 = vadd.f32 %v2260, %v2261
        %v2263 = vrot.slane %v2262, 1
        %v2264 = vadd.f32 %v2262, %v2263
        %v2265 = vadd.f32 %v2255, %v2257
        %v2266 = vrot.slane %v2265, 4
        %v2267 = vadd.f32 %v2265, %v2266
        %v2268 = vrot.slane %v2267, 2
        %v2269 = vadd.f32 %v2267, %v2268
        %v2270 = vrot.slane %v2269, 1
        %v2271 = vadd.f32 %v2269, %v2270
        %2272 = vmatpush.msra.mxu0 %v758
        %2273 = vmatpush.msra.mxu0 %v756
        %2274 = vmatpush.msra.mxu0 %v754
        %2275 = vmatpush.msra.mxu0 %v752
        %2276 = vmatpush.msra.mxu0 %v750
        %2277 = vmatpush.msra.mxu0 %v748
        %2278 = vmatpush.msra.mxu0 %v746
        %2279 = vmatpush.msra.mxu0 %v744
        %2280 = vmatpush.msra.mxu0 %v742
        %2281 = vmatpush.msra.mxu0 %v740
        %2282 = vmatpush.msra.mxu0 %v738
        %2283 = vmatpush.msra.mxu0 %v736
        %2284 = vmatpush.msra.mxu0 %v734
        %2285 = vmatpush.msra.mxu0 %v732
        %2286 = vmatpush.msra.mxu0 %v730
        %2287 = vmatpush.msra.mxu0 %v728
        %2288 = vmatmul.f32.gmra.mxu0 %v2264
        %v2289 = vpop.f32.mrf.mxu0
        %v2290 = vadd.f32 1e-05, %v2289
        %2291 = vdwg.mxu0
        %2292 = vmatpush.msra.mxu0 %v790
        %2293 = vmatpush.msra.mxu0 %v788
        %2294 = vmatpush.msra.mxu0 %v786
        %2295 = vmatpush.msra.mxu0 %v784
        %2296 = vmatpush.msra.mxu0 %v782
        %2297 = vmatpush.msra.mxu0 %v780
        %2298 = vmatpush.msra.mxu0 %v778
        %2299 = vmatpush.msra.mxu0 %v776
        %2300 = vmatpush.msra.mxu0 %v774
        %2301 = vmatpush.msra.mxu0 %v772
        %2302 = vmatpush.msra.mxu0 %v770
        %2303 = vmatpush.msra.mxu0 %v768
        %2304 = vmatpush.msra.mxu0 %v766
        %2305 = vmatpush.msra.mxu0 %v764
        %2306 = vmatpush.msra.mxu0 %v762
        %2307 = vmatpush.msra.mxu0 %v760
        %2308 = vmatmul.f32.gmra.mxu0 %v2271
        %v2309 = vpop.f32.mrf.mxu0
        %v2310 = vadd.f32 %v2290, %v2309
        %2311 = vdwg.mxu0
        %2312 = vmatpush.msra.mxu0 %v759
        %2313 = vmatpush.msra.mxu0 %v757
        %2314 = vmatpush.msra.mxu0 %v755
        %2315 = vmatpush.msra.mxu0 %v753
        %2316 = vmatpush.msra.mxu0 %v751
        %2317 = vmatpush.msra.mxu0 %v749
        %2318 = vmatpush.msra.mxu0 %v747
        %2319 = vmatpush.msra.mxu0 %v745
        %2320 = vmatpush.msra.mxu0 %v743
        %2321 = vmatpush.msra.mxu0 %v741
        %2322 = vmatpush.msra.mxu0 %v739
        %2323 = vmatpush.msra.mxu0 %v737
        %2324 = vmatpush.msra.mxu0 %v735
        %2325 = vmatpush.msra.mxu0 %v733
        %2326 = vmatpush.msra.mxu0 %v731
        %2327 = vmatpush.msra.mxu0 %v729
        %2328 = vmatmul.f32.gmra.mxu0 %v2264
        %v2329 = vpop.f32.mrf.mxu0
        %v2330 = vadd.f32 1e-05, %v2329
        %2331 = vdwg.mxu0
        %2332 = vmatpush.msra.mxu0 %v791
        %2333 = vmatpush.msra.mxu0 %v789
        %2334 = vmatpush.msra.mxu0 %v787
        %2335 = vmatpush.msra.mxu0 %v785
        %2336 = vmatpush.msra.mxu0 %v783
        %2337 = vmatpush.msra.mxu0 %v781
        %2338 = vmatpush.msra.mxu0 %v779
        %2339 = vmatpush.msra.mxu0 %v777
        %2340 = vmatpush.msra.mxu0 %v775
        %2341 = vmatpush.msra.mxu0 %v773
        %2342 = vmatpush.msra.mxu0 %v771
        %2343 = vmatpush.msra.mxu0 %v769
        %2344 = vmatpush.msra.mxu0 %v767
        %2345 = vmatpush.msra.mxu0 %v765
        %2346 = vmatpush.msra.mxu0 %v763
        %2347 = vmatpush.msra.mxu0 %v761
        %2348 = vmatmul.f32.gmra.mxu0 %v2271
        %v2349 = vpop.f32.mrf.mxu0
        %v2350 = vadd.f32 %v2330, %v2349
        %2351 = vdwg.mxu0
        %v2352 = vrsqrt.pop %v2310
        %v2353 = vmul.f32 %v2352, %v2310
        %v2354 = vmul.f32 %v2353, %v2352
        %v2355 = vmul.f32 0.5, %v2354
        %v2356 = vsub.f32 1.5, %v2355
        %v2357 = vmul.f32 %v2352, %v2356
        %vm2358 = vweird.f32 %v2310
        %vm2359 = vweird.f32 %v2352
        %vm2360 = vmor %vm2358, %vm2359
        %v2361 = vsel %vm2360, %v2352, %v2357
        %v2362 = vrsqrt.pop %v2350
        %v2363 = vmul.f32 %v2362, %v2350
        %v2364 = vmul.f32 %v2363, %v2362
        %v2365 = vmul.f32 0.5, %v2364
        %v2366 = vsub.f32 1.5, %v2365
        %v2367 = vmul.f32 %v2362, %v2366
        %vm2368 = vweird.f32 %v2350
        %vm2369 = vweird.f32 %v2362
        %vm2370 = vmor %vm2368, %vm2369
        %v2371 = vsel %vm2370, %v2362, %v2367
        %v2372 = vperm.slane %v2361, 0
        %v2373 = vperm.slane %v2371, 0
        %v2374 = vmul.f32 %v2250, %v2372
        %v2375 = vmul.f32 %v2251, %v2373
        %v2376 = vmul.f32 %v2252, %v2372
        %v2377 = vmul.f32 %v2253, %v2373
        %v2379 = vperm.slane %v1662, 0
        %v2380 = vperm.slane %v1662, 1
        %v2383 = vmul.f32 %v2374, %v2379
        %v2384 = vmul.f32 %v2375, %v2380
        %v2385 = vmul.f32 %v2376, %v2379
        %v2386 = vmul.f32 %v2377, %v2380
        %v2388 = vperm.slane %v1663, 0
        %v2389 = vperm.slane %v1663, 1
        %v2392 = vadd.f32 %v2383, %v2388
        %v2393 = vadd.f32 %v2384, %v2389
        %v2394 = vadd.f32 %v2385, %v2388
        %v2395 = vadd.f32 %v2386, %v2389
        %v2396 = vmin.f32 %v2392, 20.0
        %v2397 = vmin.f32 %v2393, 20.0
        %v2398 = vmin.f32 %v2394, 20.0
        %v2399 = vmin.f32 %v2395, 20.0
        %v2400 = vmul.f32 %v2396, 1.442695
        %v2401 = vpow.pop %v2400
        %v2402 = vmul.f32 %v2397, 1.442695
        %v2403 = vpow.pop %v2402
        %v2404 = vmul.f32 %v2398, 1.442695
        %v2405 = vpow.pop %v2404
        %v2406 = vmul.f32 %v2399, 1.442695
        %v2407 = vpow.pop %v2406
        %v2408 = vadd.f32 %v2401, 2.0
        %v2409 = vadd.f32 %v2403, 2.0
        %v2410 = vadd.f32 %v2405, 2.0
        %v2411 = vadd.f32 %v2407, 2.0
        %v2412 = vmul.f32 %v2401, %v2408
        %v2413 = vmul.f32 %v2403, %v2409
        %v2414 = vmul.f32 %v2405, %v2410
        %v2415 = vmul.f32 %v2407, %v2411
        %v2416 = vadd.f32 %v2412, 2.0
        %v2417 = vadd.f32 %v2413, 2.0
        %v2418 = vadd.f32 %v2414, 2.0
        %v2419 = vadd.f32 %v2415, 2.0
        %v2420 = vrcp.pop %v2416
        %v2421 = vmul.f32 %v2416, %v2420
        %v2422 = vsub.f32 1.0, %v2421
        %v2423 = vmul.f32 %v2420, %v2422
        %v2424 = vadd.f32 %v2420, %v2423
        %vm2425 = vweird.f32 %v2416
        %vm2426 = vweird.f32 %v2420
        %vm2427 = vmor %vm2425, %vm2426
        %v2428 = vsel %vm2427, %v2420, %v2424
        %v2429 = vand.u32 2147483647, %v2416
        %vm2430 = vcmp.eq.f32.partialorder %v2429, 8.507059e+37
        %v2431 = vand.u32 %v2416, 2147483648
        %v2432 = vor.u32 1.1754944e-38, %v2431
        %v2433 = vsel %vm2430, %v2432, %v2428
        %v2434 = vmul.f32 %v2412, %v2433
        %v2435 = vrcp.pop %v2417
        %v2436 = vmul.f32 %v2417, %v2435
        %v2437 = vsub.f32 1.0, %v2436
        %v2438 = vmul.f32 %v2435, %v2437
        %v2439 = vadd.f32 %v2435, %v2438
        %vm2440 = vweird.f32 %v2417
        %vm2441 = vweird.f32 %v2435
        %vm2442 = vmor %vm2440, %vm2441
        %v2443 = vsel %vm2442, %v2435, %v2439
        %v2444 = vand.u32 2147483647, %v2417
        %vm2445 = vcmp.eq.f32.partialorder %v2444, 8.507059e+37
        %v2446 = vand.u32 %v2417, 2147483648
        %v2447 = vor.u32 1.1754944e-38, %v2446
        %v2448 = vsel %vm2445, %v2447, %v2443
        %v2449 = vmul.f32 %v2413, %v2448
        %v2450 = vrcp.pop %v2418
        %v2451 = vmul.f32 %v2418, %v2450
        %v2452 = vsub.f32 1.0, %v2451
        %v2453 = vmul.f32 %v2450, %v2452
        %v2454 = vadd.f32 %v2450, %v2453
        %vm2455 = vweird.f32 %v2418
        %vm2456 = vweird.f32 %v2450
        %vm2457 = vmor %vm2455, %vm2456
        %v2458 = vsel %vm2457, %v2450, %v2454
        %v2459 = vand.u32 2147483647, %v2418
        %vm2460 = vcmp.eq.f32.partialorder %v2459, 8.507059e+37
        %v2461 = vand.u32 %v2418, 2147483648
        %v2462 = vor.u32 1.1754944e-38, %v2461
        %v2463 = vsel %vm2460, %v2462, %v2458
        %v2464 = vmul.f32 %v2414, %v2463
        %v2465 = vrcp.pop %v2419
        %v2466 = vmul.f32 %v2419, %v2465
        %v2467 = vsub.f32 1.0, %v2466
        %v2468 = vmul.f32 %v2465, %v2467
        %v2469 = vadd.f32 %v2465, %v2468
        %vm2470 = vweird.f32 %v2419
        %vm2471 = vweird.f32 %v2465
        %vm2472 = vmor %vm2470, %vm2471
        %v2473 = vsel %vm2472, %v2465, %v2469
        %v2474 = vand.u32 2147483647, %v2419
        %vm2475 = vcmp.eq.f32.partialorder %v2474, 8.507059e+37
        %v2476 = vand.u32 %v2419, 2147483648
        %v2477 = vor.u32 1.1754944e-38, %v2476
        %v2478 = vsel %vm2475, %v2477, %v2473
        %v2479 = vmul.f32 %v2415, %v2478
        %v2480 = vmul.f32 %v2392, %v2434
        %v2481 = vmul.f32 %v2393, %v2449
        %v2482 = vmul.f32 %v2394, %v2464
        %v2483 = vmul.f32 %v2395, %v2479
        %v2484 = vld [vmem:[#allocation17] sm:$0xff]
        %v2485 = vld [vmem:[#allocation17 + $0x8] sm:$0xff]
        %v2486 = vld [vmem:[#allocation17 + $0x10] sm:$0xff]
        %v2487 = vld [vmem:[#allocation17 + $0x18] sm:$0xff]
        %v2488 = vld [vmem:[#allocation17 + $0x20] sm:$0xff]
        %v2489 = vld [vmem:[#allocation17 + $0x28] sm:$0xff]
        %v2490 = vld [vmem:[#allocation17 + $0x30] sm:$0xff]
        %v2491 = vld [vmem:[#allocation17 + $0x38] sm:$0xff]
        %v2492 = vld [vmem:[#allocation17 + $0x40] sm:$0xff]
        %v2493 = vld [vmem:[#allocation17 + $0x48] sm:$0xff]
        %v2494 = vld [vmem:[#allocation17 + $0x50] sm:$0xff]
        %v2495 = vld [vmem:[#allocation17 + $0x58] sm:$0xff]
        %v2496 = vld [vmem:[#allocation17 + $0x60] sm:$0xff]
        %v2497 = vld [vmem:[#allocation17 + $0x68] sm:$0xff]
        %v2498 = vld [vmem:[#allocation17 + $0x70] sm:$0xff]
        %v2499 = vld [vmem:[#allocation17 + $0x78] sm:$0xff]
        %v2500 = vld [vmem:[%s15] sm:$0x3]
        %v2502 = vperm.slane %v2500, 0
        %v2503 = vperm.slane %v2500, 1
        %v2506 = vsel %vm1809, %v726, 0
        %v2508 = vsel %vm1809, %v727, 0
        %2510 = vmatpush.msra.mxu0 0.0
        %2511 = vmatpush.msra.mxu0 0.0
        %2512 = vmatpush.msra.mxu0 0.0
        %2513 = vmatpush.msra.mxu0 0.0
        %2514 = vmatpush.msra.mxu0 0.0
        %2515 = vmatpush.msra.mxu0 0.0
        %2516 = vmatpush.msra.mxu0 0.0
        %2517 = vmatpush.msra.mxu0 0.0
        %2518 = vmatpush.msra.mxu0 %v2498
        %2519 = vmatpush.msra.mxu0 %v2496
        %2520 = vmatpush.msra.mxu0 %v2494
        %2521 = vmatpush.msra.mxu0 %v2492
        %2522 = vmatpush.msra.mxu0 %v2490
        %2523 = vmatpush.msra.mxu0 %v2488
        %2524 = vmatpush.msra.mxu0 %v2486
        %2525 = vmatpush.msra.mxu0 %v2484
        %2526 = vmatmul.f32.gmra.mxu0 %v2506
        %v2527 = vpop.f32.mrf.mxu0
        %v2528 = vadd.f32 %v2502, %v2527
        %2529 = vmatmul.f32.gmra.mxu0 %v2508
        %v2530 = vpop.f32.mrf.mxu0
        %v2531 = vadd.f32 %v2502, %v2530
        %2532 = vdwg.mxu0
        %2533 = vmatpush.msra.mxu0 0.0
        %2534 = vmatpush.msra.mxu0 0.0
        %2535 = vmatpush.msra.mxu0 0.0
        %2536 = vmatpush.msra.mxu0 0.0
        %2537 = vmatpush.msra.mxu0 0.0
        %2538 = vmatpush.msra.mxu0 0.0
        %2539 = vmatpush.msra.mxu0 0.0
        %2540 = vmatpush.msra.mxu0 0.0
        %2541 = vmatpush.msra.mxu0 %v2499
        %2542 = vmatpush.msra.mxu0 %v2497
        %2543 = vmatpush.msra.mxu0 %v2495
        %2544 = vmatpush.msra.mxu0 %v2493
        %2545 = vmatpush.msra.mxu0 %v2491
        %2546 = vmatpush.msra.mxu0 %v2489
        %2547 = vmatpush.msra.mxu0 %v2487
        %2548 = vmatpush.msra.mxu0 %v2485
        %2549 = vmatmul.f32.gmra.mxu0 %v2506
        %v2550 = vpop.f32.mrf.mxu0
        %v2551 = vadd.f32 %v2503, %v2550
        %2552 = vmatmul.f32.gmra.mxu0 %v2508
        %v2553 = vpop.f32.mrf.mxu0
        %v2554 = vadd.f32 %v2503, %v2553
        %2555 = vdwg.mxu0
        %v2556 = vadd.f32 %v2480, %v2528
        %v2557 = vadd.f32 %v2481, %v2551
        %v2558 = vadd.f32 %v2482, %v2531
        %v2559 = vadd.f32 %v2483, %v2554
        %2560 = vst [vmem:[%s725] sm:$0xff] %v2556
        %2561 = vst [vmem:[%s725 + $0x8] sm:$0xff] %v2557
        %2562 = vst [vmem:[%s725 + $0x10] sm:$0xff] %v2558
        %2563 = vst [vmem:[%s725 + $0x18] sm:$0xff] %v2559
        %s2564 = sand.u32 %s399, 1
        %s2565 = scalar_lea.sflag [#allocation4], %s2564
        %s2566 = sand.u32 %s399, 1
        %s2567 = smul.addr %s2566, 32
        %s2568 = scalar_lea.vmem [#allocation19], %s2567
        // Predicated region
        $region125: #{tpu_custom_call.1} parent=83 // pred_check
          %p2569 = pneg %p409
        $region126: #{tpu_custom_call.1} parent=83 // pred_check_branch
          %2571 = sbr.rel (%p2569) target = $region128
        $region127: #{tpu_custom_call.1} parent=83 // pred_region
          %2573 = vsyncadd %s2565, 0
          %s2574 = smul.addr %s40, 4
          %s2575 = smul.addr %s2574, 8
          %s2576 = scalar_lea.hbm %s16, %s2575
          %s2577 = sshll.u32 %s2568, 4
          %s2578 = int_to_ptr.vmem [resolvable:$true] %s2577
          %s2579 = sshll.u32 %s2576, 4
          %s2580 = int_to_ptr.hbm [resolvable:$true] %s2579
          %2585 = dma.vmem_to_hbm [thread:$0]  %s2578, 512, %s2580, %s2565, 256, 256, 16
        $region128: #{tpu_custom_call.1} parent=83 // pred_fallthru
          _
      $region84: #{tpu_custom_call.1} parent=5 // pred_fallthru
        _
      %p2586 = scmp.le.s32.totalorder 2, %s35
      // Predicated region
      $region129: #{tpu_custom_call.1} parent=5 // pred_check
        %p2587 = pneg %p2586
      $region130: #{tpu_custom_call.1} parent=5 // pred_check_branch
        %2589 = sbr.rel (%p2587) target = $region132
      $region131: #{tpu_custom_call.1} parent=5 // pred_region
        %s2590 = ssub.s32 %s35, 2
        // Predicated region
        $region133: #{tpu_custom_call.1} parent=131 // pred_check
          %p2591 = pneg %p415
        $region134: #{tpu_custom_call.1} parent=131 // pred_check_branch
          %2593 = sbr.rel (%p2591) target = $region136
        $region135: #{tpu_custom_call.1} parent=131 // pred_region
          %s2594 = sand.u32 %s400, 1
          %s2595 = scalar_lea.sflag [#allocation4], %s2594
          %s2596 = sand.u32 %s400, 1
          %s2597 = smul.addr %s2596, 32
          %s2598 = scalar_lea.vmem [#allocation19], %s2597
          %2600 = dma.done %s2595, 512
        $region136: #{tpu_custom_call.1} parent=131 // pred_fallthru
          _
      $region132: #{tpu_custom_call.1} parent=5 // pred_fallthru
        _
    $region6: #{tpu_custom_call.1} parent=1 // loop_footer
      %s39 = sadd.s32 1, %s35
    $region7: #{tpu_custom_call.1} parent=1 // loop_footer_branch
      %34 = sbr.rel target = $region3
    $region8: #{tpu_custom_call.1} parent=1 // loop_exit
      _
    %2601 = vsyncpa [#allocation3], 1
    %s2602 = scalar_lea.sflag [#allocation3], 1
    %2603 = vsyncpa %s2602, 1
    %2604 = vsyncpa [#allocation6], 1
    %s2605 = scalar_lea.sflag [#allocation6], 1
    %2606 = vsyncpa %s2605, 1
    %2607 = vsyncpa [#allocation9], 1
    %2608 = vsyncpa [#allocation12], 1
    %2609 = vsyncpa [#allocation15], 1
    %2610 = vsyncpa [#allocation18], 1
    %2611 = vsyncpa [#allocation4], 1
    %s2612 = scalar_lea.sflag [#allocation4], 1
    %2613 = vsyncpa %s2612, 1

</llo_original>
